<compile_context>
chip_gen: v7x
topology: tpu7x:2x2x1
jax: 0.10.0
libtpu: 0.0.40
codegen_flags: <defaults>
</compile_context>

<pallas_src>
import functools

import jax
import jax.numpy as jnp
from jax.experimental import pallas as pl
from jax.experimental.pallas import tpu as pltpu

# Module hyper-parameters (CLASS_NAMES is undefined in the source; pick 4 classes).
SEQ_LEN = 8
BATCH = 2
INPUT_DIM = 16
N_HIDDEN = 32
N_CLASSES = 4


def _book_lstm_kernel(x_ref,
                      wih0_ref, whh0_ref, b0_ref,
                      w1s_ref, b1_ref,
                      wl1_ref, bl1_ref,
                      wl2_ref, bl2_ref,
                      y_ref,
                      *, seq_len, n_hidden):
  """2-layer LSTM over time + linear1 + linear2, fully resident in VMEM."""
  H = n_hidden
  S = seq_len
  B = x_ref.shape[1]
  D = x_ref.shape[2]

  # Hoist all weight/bias loads & broadcasts out of the unrolled time loop.
  whh0 = whh0_ref[...]                                    # (H, 4H)
  w1s = w1s_ref[...]                                      # (2H, 4H)  [wih1; whh1]
  b1b = jnp.broadcast_to(b1_ref[...], (B, 4 * H))         # (B, 4H)

  # (1) Precompute the layer-0 input projection for all timesteps at once and
  # fold in the layer-0 bias. One well-filled matmul instead of S tiny ones.
  x_flat = x_ref[...].reshape(S * B, D)                   # (S*B, D)
  gx0 = (jnp.dot(x_flat, wih0_ref[...],
                 preferred_element_type=jnp.float32)
         + b0_ref[...])                                   # (S*B, 4H)

  def gate_act(gates):
    # Two full-width EUP passes, then pick the gate blocks.
    sg = jax.nn.sigmoid(gates)
    tg = jnp.tanh(gates)
    i = sg[:, 0:H]
    f = sg[:, H:2 * H]
    g = tg[:, 2 * H:3 * H]
    o = sg[:, 3 * H:4 * H]
    return i, f, g, o

  def cell_tail(gates, c):
    i, f, g, o = gate_act(gates)
    c_new = f * c + i * g
    h_new = o * jnp.tanh(c_new)
    return h_new, c_new

  zeros = jnp.zeros((B, H), jnp.float32)
  h0, c0, h1, c1 = zeros, zeros, zeros, zeros

  # (3) Fully unrolled recurrence: static trip count, static indexing.
  for t in range(S):
    # Layer 0: only the recurrent matmul remains on the per-step critical path.
    gates0 = gx0[t * B:(t + 1) * B, :] + jnp.dot(
        h0, whh0, preferred_element_type=jnp.float32)
    h0, c0 = cell_tail(gates0, c0)
    # TODO(synk): nn.LSTM inter-layer dropout(p=0.3) is omitted (inference semantics).
    # Layer 1: (2) single fused matmul over concat([h0, h1]) and the stacked weight.
    hin1 = jnp.concatenate([h0, h1], axis=1)              # (B, 2H)
    gates1 = jnp.dot(hin1, w1s, preferred_element_type=jnp.float32) + b1b
    h1, c1 = cell_tail(gates1, c1)

  # linear1 applied to lstm_out then [-1] selected == linear1(last top-layer h).
  lin1 = jnp.dot(h1, wl1_ref[...], preferred_element_type=jnp.float32) + bl1_ref[...]
  y_ref[...] = (jnp.dot(lin1, wl2_ref[...], preferred_element_type=jnp.float32)
                + bl2_ref[...])


def book_lstm_forward(sequences, params, *, seq_len, batch, n_hidden, n_classes):
  """Wrapper: reshape like the PyTorch forward, pack weights, invoke the kernel."""
  x = sequences.reshape(seq_len, batch, -1).astype(jnp.float32)

  # Host-side (trace-time) weight packing: fuse layer-1 input + recurrent weights.
  w1s = jnp.concatenate([params["wih1"], params["whh1"]], axis=0)   # (2H, 4H)

  inputs = (
      x,
      params["wih0"], params["whh0"], params["b0"],
      w1s, params["b1"],
      params["w1"], params["bl1"],
      params["w2"], params["bl2"],
  )
  vmem_spec = pl.BlockSpec(memory_space=pltpu.MemorySpace.VMEM)
  kernel = functools.partial(_book_lstm_kernel, seq_len=seq_len, n_hidden=n_hidden)
  return pl.pallas_call(
      kernel,
      out_shape=jax.ShapeDtypeStruct((batch, n_classes), jnp.float32),
      in_specs=[vmem_spec] * len(inputs),
      out_specs=vmem_spec,
  )(*inputs)


def init_params(key, input_dim, n_hidden, n_classes):
  """Deterministic init mimicking PyTorch's uniform(-1/sqrt(H), 1/sqrt(H))."""
  H = n_hidden
  half = H // 2
  k = 1.0 / jnp.sqrt(H)
  keys = jax.random.split(key, 12)
  u = lambda kk, shape, s: jax.random.uniform(kk, shape, jnp.float32, -s, s)
  params = {
      # layer 0: weights transposed to (in, 4H); bias = b_ih + b_hh pre-summed.
      "wih0": u(keys[0], (input_dim, 4 * H), k),
      "whh0": u(keys[1], (H, 4 * H), k),
      "b0": u(keys[2], (1, 4 * H), k) + u(keys[3], (1, 4 * H), k),
      # layer 1
      "wih1": u(keys[4], (H, 4 * H), k),
      "whh1": u(keys[5], (H, 4 * H), k),
      "b1": u(keys[6], (1, 4 * H), k) + u(keys[7], (1, 4 * H), k),
      # linear heads, stored (in, out)
      "w1": u(keys[8], (H, half), 1.0 / jnp.sqrt(H)),
      "bl1": u(keys[9], (1, half), 1.0 / jnp.sqrt(H)),
      "w2": u(keys[10], (half, n_classes), 1.0 / jnp.sqrt(half)),
      "bl2": u(keys[11], (1, n_classes), 1.0 / jnp.sqrt(half)),
  }
  return params


def reference_forward(sequences, params, *, seq_len, batch, n_hidden):
  """Pure-JAX reference (unfused weights) for validation."""
  H = n_hidden
  x = sequences.reshape(seq_len, batch, -1).astype(jnp.float32)

  def cell(x_t, h, c, wih, whh, b):
    g = x_t @ wih + h @ whh + b
    i = jax.nn.sigmoid(g[:, 0:H])
    f = jax.nn.sigmoid(g[:, H:2 * H])
    gg = jnp.tanh(g[:, 2 * H:3 * H])
    o = jax.nn.sigmoid(g[:, 3 * H:4 * H])
    c_new = f * c + i * gg
    return o * jnp.tanh(c_new), c_new

  h0 = c0 = h1 = c1 = jnp.zeros((batch, H), jnp.float32)
  for t in range(seq_len):
    h0, c0 = cell(x[t], h0, c0, params["wih0"], params["whh0"], params["b0"])
    h1, c1 = cell(h0, h1, c1, params["wih1"], params["whh1"], params["b1"])
  lin1 = h1 @ params["w1"] + params["bl1"]
  return lin1 @ params["w2"] + params["bl2"]


if __name__ == "__main__":
  key = jax.random.PRNGKey(0)
  k_x, k_p = jax.random.split(key)
  sequences = jax.random.normal(k_x, (SEQ_LEN, BATCH, INPUT_DIM), jnp.float32)
  params = init_params(k_p, INPUT_DIM, N_HIDDEN, N_CLASSES)

  y = book_lstm_forward(sequences, params,
                        seq_len=SEQ_LEN, batch=BATCH,
                        n_hidden=N_HIDDEN, n_classes=N_CLASSES)
  y = jax.block_until_ready(y)

  y_ref = reference_forward(sequences, params,
                            seq_len=SEQ_LEN, batch=BATCH, n_hidden=N_HIDDEN)
  assert y.shape == (BATCH, N_CLASSES)
  assert jnp.allclose(y, y_ref, atol=1e-5, rtol=1e-5), "mismatch vs JAX reference"
  print("KERNEL_OK")
</pallas_src>

<mosaic_0001>
module attributes {stable_mosaic.version = 11 : i64} {
  func.func @_book_lstm_kernel(%arg0: memref<8x2x16xf32, #tpu.memory_space<vmem>>, %arg1: memref<16x128xf32, #tpu.memory_space<vmem>>, %arg2: memref<32x128xf32, #tpu.memory_space<vmem>>, %arg3: memref<1x128xf32, #tpu.memory_space<vmem>>, %arg4: memref<64x128xf32, #tpu.memory_space<vmem>>, %arg5: memref<1x128xf32, #tpu.memory_space<vmem>>, %arg6: memref<32x16xf32, #tpu.memory_space<vmem>>, %arg7: memref<1x16xf32, #tpu.memory_space<vmem>>, %arg8: memref<16x4xf32, #tpu.memory_space<vmem>>, %arg9: memref<1x4xf32, #tpu.memory_space<vmem>>, %arg10: memref<2x4xf32, #tpu.memory_space<vmem>>) attributes {dimension_semantics = [], scalar_prefetch = 0 : i64, scratch_operands = 0 : i64, tpu.core_type = #tpu.core_type<tc>} {
    %c0 = arith.constant 0 : index
    %c0_0 = arith.constant 0 : index
    %0 = vector.load %arg2[%c0, %c0_0] : memref<32x128xf32, #tpu.memory_space<vmem>>, vector<32x128xf32>
    %c0_1 = arith.constant 0 : index
    %c0_2 = arith.constant 0 : index
    %1 = vector.load %arg4[%c0_1, %c0_2] : memref<64x128xf32, #tpu.memory_space<vmem>>, vector<64x128xf32>
    %c0_3 = arith.constant 0 : index
    %c0_4 = arith.constant 0 : index
    %2 = vector.load %arg5[%c0_3, %c0_4] : memref<1x128xf32, #tpu.memory_space<vmem>>, vector<1x128xf32>
    %3 = vector.shape_cast %2 : vector<1x128xf32> to vector<1x128xf32>
    %4 = vector.broadcast %3 : vector<1x128xf32> to vector<2x128xf32>
    %c0_5 = arith.constant 0 : index
    %c0_6 = arith.constant 0 : index
    %c0_7 = arith.constant 0 : index
    %5 = vector.load %arg0[%c0_5, %c0_6, %c0_7] : memref<8x2x16xf32, #tpu.memory_space<vmem>>, vector<8x2x16xf32>
    %6 = vector.shape_cast %5 : vector<8x2x16xf32> to vector<16x16xf32>
    %c0_8 = arith.constant 0 : index
    %c0_9 = arith.constant 0 : index
    %7 = vector.load %arg1[%c0_8, %c0_9] : memref<16x128xf32, #tpu.memory_space<vmem>>, vector<16x128xf32>
    %cst = arith.constant dense<0.000000e+00> : vector<16x128xf32>
    %8 = tpu.matmul %6, %7, %cst {dimension_numbers = #tpu.dot_dimension_numbers<[1], [0], [0], [1], [0, 0, 1, 1], [], []>} : vector<16x16xf32>, vector<16x128xf32>, vector<16x128xf32> -> vector<16x128xf32>
    %c0_10 = arith.constant 0 : index
    %c0_11 = arith.constant 0 : index
    %9 = vector.load %arg3[%c0_10, %c0_11] : memref<1x128xf32, #tpu.memory_space<vmem>>, vector<1x128xf32>
    %10 = vector.broadcast %9 : vector<1x128xf32> to vector<16x128xf32>
    %11 = arith.addf %8, %10 : vector<16x128xf32>
    %cst_12 = arith.constant 0.000000e+00 : f32
    %12 = vector.broadcast %cst_12 : f32 to vector<2x32xf32>
    %13 = vector.extract_strided_slice %11 {offsets = [0, 0], sizes = [2, 128], strides = [1, 1]} : vector<16x128xf32> to vector<2x128xf32>
    %cst_13 = arith.constant dense<0.000000e+00> : vector<2x128xf32>
    %14 = tpu.matmul %12, %0, %cst_13 {dimension_numbers = #tpu.dot_dimension_numbers<[1], [0], [0], [1], [0, 0, 1, 1], [], []>} : vector<2x32xf32>, vector<32x128xf32>, vector<2x128xf32> -> vector<2x128xf32>
    %15 = arith.addf %13, %14 : vector<2x128xf32>
    %16 = arith.negf %15 : vector<2x128xf32>
    %17 = math.exp %16 : vector<2x128xf32>
    %cst_14 = arith.constant 1.000000e+00 : f32
    %18 = vector.broadcast %cst_14 : f32 to vector<2x128xf32>
    %19 = arith.addf %18, %17 : vector<2x128xf32>
    %20 = arith.divf %18, %19 : vector<2x128xf32>
    %21 = math.tanh %15 : vector<2x128xf32>
    %22 = vector.extract_strided_slice %20 {offsets = [0, 0], sizes = [2, 32], strides = [1, 1]} : vector<2x128xf32> to vector<2x32xf32>
    %23 = vector.extract_strided_slice %20 {offsets = [0, 32], sizes = [2, 32], strides = [1, 1]} : vector<2x128xf32> to vector<2x32xf32>
    %24 = vector.extract_strided_slice %21 {offsets = [0, 64], sizes = [2, 32], strides = [1, 1]} : vector<2x128xf32> to vector<2x32xf32>
    %25 = vector.extract_strided_slice %20 {offsets = [0, 96], sizes = [2, 32], strides = [1, 1]} : vector<2x128xf32> to vector<2x32xf32>
    %26 = arith.mulf %23, %12 : vector<2x32xf32>
    %27 = arith.mulf %22, %24 : vector<2x32xf32>
    %28 = arith.addf %26, %27 : vector<2x32xf32>
    %29 = math.tanh %28 : vector<2x32xf32>
    %30 = arith.mulf %25, %29 : vector<2x32xf32>
    %31 = tpu.concatenate %30, %12 in 1 : vector<2x32xf32>, vector<2x32xf32> -> vector<2x64xf32>
    %cst_15 = arith.constant dense<0.000000e+00> : vector<2x128xf32>
    %32 = tpu.matmul %31, %1, %cst_15 {dimension_numbers = #tpu.dot_dimension_numbers<[1], [0], [0], [1], [0, 0, 1, 1], [], []>} : vector<2x64xf32>, vector<64x128xf32>, vector<2x128xf32> -> vector<2x128xf32>
    %33 = arith.addf %32, %4 : vector<2x128xf32>
    %34 = arith.negf %33 : vector<2x128xf32>
    %35 = math.exp %34 : vector<2x128xf32>
    %cst_16 = arith.constant 1.000000e+00 : f32
    %36 = vector.broadcast %cst_16 : f32 to vector<2x128xf32>
    %37 = arith.addf %36, %35 : vector<2x128xf32>
    %38 = arith.divf %36, %37 : vector<2x128xf32>
    %39 = math.tanh %33 : vector<2x128xf32>
    %40 = vector.extract_strided_slice %38 {offsets = [0, 0], sizes = [2, 32], strides = [1, 1]} : vector<2x128xf32> to vector<2x32xf32>
    %41 = vector.extract_strided_slice %38 {offsets = [0, 32], sizes = [2, 32], strides = [1, 1]} : vector<2x128xf32> to vector<2x32xf32>
    %42 = vector.extract_strided_slice %39 {offsets = [0, 64], sizes = [2, 32], strides = [1, 1]} : vector<2x128xf32> to vector<2x32xf32>
    %43 = vector.extract_strided_slice %38 {offsets = [0, 96], sizes = [2, 32], strides = [1, 1]} : vector<2x128xf32> to vector<2x32xf32>
    %44 = arith.mulf %41, %12 : vector<2x32xf32>
    %45 = arith.mulf %40, %42 : vector<2x32xf32>
    %46 = arith.addf %44, %45 : vector<2x32xf32>
    %47 = math.tanh %46 : vector<2x32xf32>
    %48 = arith.mulf %43, %47 : vector<2x32xf32>
    %49 = vector.extract_strided_slice %11 {offsets = [2, 0], sizes = [2, 128], strides = [1, 1]} : vector<16x128xf32> to vector<2x128xf32>
    %cst_17 = arith.constant dense<0.000000e+00> : vector<2x128xf32>
    %50 = tpu.matmul %30, %0, %cst_17 {dimension_numbers = #tpu.dot_dimension_numbers<[1], [0], [0], [1], [0, 0, 1, 1], [], []>} : vector<2x32xf32>, vector<32x128xf32>, vector<2x128xf32> -> vector<2x128xf32>
    %51 = arith.addf %49, %50 : vector<2x128xf32>
    %52 = arith.negf %51 : vector<2x128xf32>
    %53 = math.exp %52 : vector<2x128xf32>
    %cst_18 = arith.constant 1.000000e+00 : f32
    %54 = vector.broadcast %cst_18 : f32 to vector<2x128xf32>
    %55 = arith.addf %54, %53 : vector<2x128xf32>
    %56 = arith.divf %54, %55 : vector<2x128xf32>
    %57 = math.tanh %51 : vector<2x128xf32>
    %58 = vector.extract_strided_slice %56 {offsets = [0, 0], sizes = [2, 32], strides = [1, 1]} : vector<2x128xf32> to vector<2x32xf32>
    %59 = vector.extract_strided_slice %56 {offsets = [0, 32], sizes = [2, 32], strides = [1, 1]} : vector<2x128xf32> to vector<2x32xf32>
    %60 = vector.extract_strided_slice %57 {offsets = [0, 64], sizes = [2, 32], strides = [1, 1]} : vector<2x128xf32> to vector<2x32xf32>
    %61 = vector.extract_strided_slice %56 {offsets = [0, 96], sizes = [2, 32], strides = [1, 1]} : vector<2x128xf32> to vector<2x32xf32>
    %62 = arith.mulf %59, %28 : vector<2x32xf32>
    %63 = arith.mulf %58, %60 : vector<2x32xf32>
    %64 = arith.addf %62, %63 : vector<2x32xf32>
    %65 = math.tanh %64 : vector<2x32xf32>
    %66 = arith.mulf %61, %65 : vector<2x32xf32>
    %67 = tpu.concatenate %66, %48 in 1 : vector<2x32xf32>, vector<2x32xf32> -> vector<2x64xf32>
    %cst_19 = arith.constant dense<0.000000e+00> : vector<2x128xf32>
    %68 = tpu.matmul %67, %1, %cst_19 {dimension_numbers = #tpu.dot_dimension_numbers<[1], [0], [0], [1], [0, 0, 1, 1], [], []>} : vector<2x64xf32>, vector<64x128xf32>, vector<2x128xf32> -> vector<2x128xf32>
    %69 = arith.addf %68, %4 : vector<2x128xf32>
    %70 = arith.negf %69 : vector<2x128xf32>
    %71 = math.exp %70 : vector<2x128xf32>
    %cst_20 = arith.constant 1.000000e+00 : f32
    %72 = vector.broadcast %cst_20 : f32 to vector<2x128xf32>
    %73 = arith.addf %72, %71 : vector<2x128xf32>
    %74 = arith.divf %72, %73 : vector<2x128xf32>
    %75 = math.tanh %69 : vector<2x128xf32>
    %76 = vector.extract_strided_slice %74 {offsets = [0, 0], sizes = [2, 32], strides = [1, 1]} : vector<2x128xf32> to vector<2x32xf32>
    %77 = vector.extract_strided_slice %74 {offsets = [0, 32], sizes = [2, 32], strides = [1, 1]} : vector<2x128xf32> to vector<2x32xf32>
    %78 = vector.extract_strided_slice %75 {offsets = [0, 64], sizes = [2, 32], strides = [1, 1]} : vector<2x128xf32> to vector<2x32xf32>
    %79 = vector.extract_strided_slice %74 {offsets = [0, 96], sizes = [2, 32], strides = [1, 1]} : vector<2x128xf32> to vector<2x32xf32>
    %80 = arith.mulf %77, %46 : vector<2x32xf32>
    %81 = arith.mulf %76, %78 : vector<2x32xf32>
    %82 = arith.addf %80, %81 : vector<2x32xf32>
    %83 = math.tanh %82 : vector<2x32xf32>
    %84 = arith.mulf %79, %83 : vector<2x32xf32>
    %85 = vector.extract_strided_slice %11 {offsets = [4, 0], sizes = [2, 128], strides = [1, 1]} : vector<16x128xf32> to vector<2x128xf32>
    %cst_21 = arith.constant dense<0.000000e+00> : vector<2x128xf32>
    %86 = tpu.matmul %66, %0, %cst_21 {dimension_numbers = #tpu.dot_dimension_numbers<[1], [0], [0], [1], [0, 0, 1, 1], [], []>} : vector<2x32xf32>, vector<32x128xf32>, vector<2x128xf32> -> vector<2x128xf32>
    %87 = arith.addf %85, %86 : vector<2x128xf32>
    %88 = arith.negf %87 : vector<2x128xf32>
    %89 = math.exp %88 : vector<2x128xf32>
    %cst_22 = arith.constant 1.000000e+00 : f32
    %90 = vector.broadcast %cst_22 : f32 to vector<2x128xf32>
    %91 = arith.addf %90, %89 : vector<2x128xf32>
    %92 = arith.divf %90, %91 : vector<2x128xf32>
    %93 = math.tanh %87 : vector<2x128xf32>
    %94 = vector.extract_strided_slice %92 {offsets = [0, 0], sizes = [2, 32], strides = [1, 1]} : vector<2x128xf32> to vector<2x32xf32>
    %95 = vector.extract_strided_slice %92 {offsets = [0, 32], sizes = [2, 32], strides = [1, 1]} : vector<2x128xf32> to vector<2x32xf32>
    %96 = vector.extract_strided_slice %93 {offsets = [0, 64], sizes = [2, 32], strides = [1, 1]} : vector<2x128xf32> to vector<2x32xf32>
    %97 = vector.extract_strided_slice %92 {offsets = [0, 96], sizes = [2, 32], strides = [1, 1]} : vector<2x128xf32> to vector<2x32xf32>
    %98 = arith.mulf %95, %64 : vector<2x32xf32>
    %99 = arith.mulf %94, %96 : vector<2x32xf32>
    %100 = arith.addf %98, %99 : vector<2x32xf32>
    %101 = math.tanh %100 : vector<2x32xf32>
    %102 = arith.mulf %97, %101 : vector<2x32xf32>
    %103 = tpu.concatenate %102, %84 in 1 : vector<2x32xf32>, vector<2x32xf32> -> vector<2x64xf32>
    %cst_23 = arith.constant dense<0.000000e+00> : vector<2x128xf32>
    %104 = tpu.matmul %103, %1, %cst_23 {dimension_numbers = #tpu.dot_dimension_numbers<[1], [0], [0], [1], [0, 0, 1, 1], [], []>} : vector<2x64xf32>, vector<64x128xf32>, vector<2x128xf32> -> vector<2x128xf32>
    %105 = arith.addf %104, %4 : vector<2x128xf32>
    %106 = arith.negf %105 : vector<2x128xf32>
    %107 = math.exp %106 : vector<2x128xf32>
    %cst_24 = arith.constant 1.000000e+00 : f32
    %108 = vector.broadcast %cst_24 : f32 to vector<2x128xf32>
    %109 = arith.addf %108, %107 : vector<2x128xf32>
    %110 = arith.divf %108, %109 : vector<2x128xf32>
    %111 = math.tanh %105 : vector<2x128xf32>
    %112 = vector.extract_strided_slice %110 {offsets = [0, 0], sizes = [2, 32], strides = [1, 1]} : vector<2x128xf32> to vector<2x32xf32>
    %113 = vector.extract_strided_slice %110 {offsets = [0, 32], sizes = [2, 32], strides = [1, 1]} : vector<2x128xf32> to vector<2x32xf32>
    %114 = vector.extract_strided_slice %111 {offsets = [0, 64], sizes = [2, 32], strides = [1, 1]} : vector<2x128xf32> to vector<2x32xf32>
    %115 = vector.extract_strided_slice %110 {offsets = [0, 96], sizes = [2, 32], strides = [1, 1]} : vector<2x128xf32> to vector<2x32xf32>
    %116 = arith.mulf %113, %82 : vector<2x32xf32>
    %117 = arith.mulf %112, %114 : vector<2x32xf32>
    %118 = arith.addf %116, %117 : vector<2x32xf32>
    %119 = math.tanh %118 : vector<2x32xf32>
    %120 = arith.mulf %115, %119 : vector<2x32xf32>
    %121 = vector.extract_strided_slice %11 {offsets = [6, 0], sizes = [2, 128], strides = [1, 1]} : vector<16x128xf32> to vector<2x128xf32>
    %cst_25 = arith.constant dense<0.000000e+00> : vector<2x128xf32>
    %122 = tpu.matmul %102, %0, %cst_25 {dimension_numbers = #tpu.dot_dimension_numbers<[1], [0], [0], [1], [0, 0, 1, 1], [], []>} : vector<2x32xf32>, vector<32x128xf32>, vector<2x128xf32> -> vector<2x128xf32>
    %123 = arith.addf %121, %122 : vector<2x128xf32>
    %124 = arith.negf %123 : vector<2x128xf32>
    %125 = math.exp %124 : vector<2x128xf32>
    %cst_26 = arith.constant 1.000000e+00 : f32
    %126 = vector.broadcast %cst_26 : f32 to vector<2x128xf32>
    %127 = arith.addf %126, %125 : vector<2x128xf32>
    %128 = arith.divf %126, %127 : vector<2x128xf32>
    %129 = math.tanh %123 : vector<2x128xf32>
    %130 = vector.extract_strided_slice %128 {offsets = [0, 0], sizes = [2, 32], strides = [1, 1]} : vector<2x128xf32> to vector<2x32xf32>
    %131 = vector.extract_strided_slice %128 {offsets = [0, 32], sizes = [2, 32], strides = [1, 1]} : vector<2x128xf32> to vector<2x32xf32>
    %132 = vector.extract_strided_slice %129 {offsets = [0, 64], sizes = [2, 32], strides = [1, 1]} : vector<2x128xf32> to vector<2x32xf32>
    %133 = vector.extract_strided_slice %128 {offsets = [0, 96], sizes = [2, 32], strides = [1, 1]} : vector<2x128xf32> to vector<2x32xf32>
    %134 = arith.mulf %131, %100 : vector<2x32xf32>
    %135 = arith.mulf %130, %132 : vector<2x32xf32>
    %136 = arith.addf %134, %135 : vector<2x32xf32>
    %137 = math.tanh %136 : vector<2x32xf32>
    %138 = arith.mulf %133, %137 : vector<2x32xf32>
    %139 = tpu.concatenate %138, %120 in 1 : vector<2x32xf32>, vector<2x32xf32> -> vector<2x64xf32>
    %cst_27 = arith.constant dense<0.000000e+00> : vector<2x128xf32>
    %140 = tpu.matmul %139, %1, %cst_27 {dimension_numbers = #tpu.dot_dimension_numbers<[1], [0], [0], [1], [0, 0, 1, 1], [], []>} : vector<2x64xf32>, vector<64x128xf32>, vector<2x128xf32> -> vector<2x128xf32>
    %141 = arith.addf %140, %4 : vector<2x128xf32>
    %142 = arith.negf %141 : vector<2x128xf32>
    %143 = math.exp %142 : vector<2x128xf32>
    %cst_28 = arith.constant 1.000000e+00 : f32
    %144 = vector.broadcast %cst_28 : f32 to vector<2x128xf32>
    %145 = arith.addf %144, %143 : vector<2x128xf32>
    %146 = arith.divf %144, %145 : vector<2x128xf32>
    %147 = math.tanh %141 : vector<2x128xf32>
    %148 = vector.extract_strided_slice %146 {offsets = [0, 0], sizes = [2, 32], strides = [1, 1]} : vector<2x128xf32> to vector<2x32xf32>
    %149 = vector.extract_strided_slice %146 {offsets = [0, 32], sizes = [2, 32], strides = [1, 1]} : vector<2x128xf32> to vector<2x32xf32>
    %150 = vector.extract_strided_slice %147 {offsets = [0, 64], sizes = [2, 32], strides = [1, 1]} : vector<2x128xf32> to vector<2x32xf32>
    %151 = vector.extract_strided_slice %146 {offsets = [0, 96], sizes = [2, 32], strides = [1, 1]} : vector<2x128xf32> to vector<2x32xf32>
    %152 = arith.mulf %149, %118 : vector<2x32xf32>
    %153 = arith.mulf %148, %150 : vector<2x32xf32>
    %154 = arith.addf %152, %153 : vector<2x32xf32>
    %155 = math.tanh %154 : vector<2x32xf32>
    %156 = arith.mulf %151, %155 : vector<2x32xf32>
    %157 = vector.extract_strided_slice %11 {offsets = [8, 0], sizes = [2, 128], strides = [1, 1]} : vector<16x128xf32> to vector<2x128xf32>
    %cst_29 = arith.constant dense<0.000000e+00> : vector<2x128xf32>
    %158 = tpu.matmul %138, %0, %cst_29 {dimension_numbers = #tpu.dot_dimension_numbers<[1], [0], [0], [1], [0, 0, 1, 1], [], []>} : vector<2x32xf32>, vector<32x128xf32>, vector<2x128xf32> -> vector<2x128xf32>
    %159 = arith.addf %157, %158 : vector<2x128xf32>
    %160 = arith.negf %159 : vector<2x128xf32>
    %161 = math.exp %160 : vector<2x128xf32>
    %cst_30 = arith.constant 1.000000e+00 : f32
    %162 = vector.broadcast %cst_30 : f32 to vector<2x128xf32>
    %163 = arith.addf %162, %161 : vector<2x128xf32>
    %164 = arith.divf %162, %163 : vector<2x128xf32>
    %165 = math.tanh %159 : vector<2x128xf32>
    %166 = vector.extract_strided_slice %164 {offsets = [0, 0], sizes = [2, 32], strides = [1, 1]} : vector<2x128xf32> to vector<2x32xf32>
    %167 = vector.extract_strided_slice %164 {offsets = [0, 32], sizes = [2, 32], strides = [1, 1]} : vector<2x128xf32> to vector<2x32xf32>
    %168 = vector.extract_strided_slice %165 {offsets = [0, 64], sizes = [2, 32], strides = [1, 1]} : vector<2x128xf32> to vector<2x32xf32>
    %169 = vector.extract_strided_slice %164 {offsets = [0, 96], sizes = [2, 32], strides = [1, 1]} : vector<2x128xf32> to vector<2x32xf32>
    %170 = arith.mulf %167, %136 : vector<2x32xf32>
    %171 = arith.mulf %166, %168 : vector<2x32xf32>
    %172 = arith.addf %170, %171 : vector<2x32xf32>
    %173 = math.tanh %172 : vector<2x32xf32>
    %174 = arith.mulf %169, %173 : vector<2x32xf32>
    %175 = tpu.concatenate %174, %156 in 1 : vector<2x32xf32>, vector<2x32xf32> -> vector<2x64xf32>
    %cst_31 = arith.constant dense<0.000000e+00> : vector<2x128xf32>
    %176 = tpu.matmul %175, %1, %cst_31 {dimension_numbers = #tpu.dot_dimension_numbers<[1], [0], [0], [1], [0, 0, 1, 1], [], []>} : vector<2x64xf32>, vector<64x128xf32>, vector<2x128xf32> -> vector<2x128xf32>
    %177 = arith.addf %176, %4 : vector<2x128xf32>
    %178 = arith.negf %177 : vector<2x128xf32>
    %179 = math.exp %178 : vector<2x128xf32>
    %cst_32 = arith.constant 1.000000e+00 : f32
    %180 = vector.broadcast %cst_32 : f32 to vector<2x128xf32>
    %181 = arith.addf %180, %179 : vector<2x128xf32>
    %182 = arith.divf %180, %181 : vector<2x128xf32>
    %183 = math.tanh %177 : vector<2x128xf32>
    %184 = vector.extract_strided_slice %182 {offsets = [0, 0], sizes = [2, 32], strides = [1, 1]} : vector<2x128xf32> to vector<2x32xf32>
    %185 = vector.extract_strided_slice %182 {offsets = [0, 32], sizes = [2, 32], strides = [1, 1]} : vector<2x128xf32> to vector<2x32xf32>
    %186 = vector.extract_strided_slice %183 {offsets = [0, 64], sizes = [2, 32], strides = [1, 1]} : vector<2x128xf32> to vector<2x32xf32>
    %187 = vector.extract_strided_slice %182 {offsets = [0, 96], sizes = [2, 32], strides = [1, 1]} : vector<2x128xf32> to vector<2x32xf32>
    %188 = arith.mulf %185, %154 : vector<2x32xf32>
    %189 = arith.mulf %184, %186 : vector<2x32xf32>
    %190 = arith.addf %188, %189 : vector<2x32xf32>
    %191 = math.tanh %190 : vector<2x32xf32>
    %192 = arith.mulf %187, %191 : vector<2x32xf32>
    %193 = vector.extract_strided_slice %11 {offsets = [10, 0], sizes = [2, 128], strides = [1, 1]} : vector<16x128xf32> to vector<2x128xf32>
    %cst_33 = arith.constant dense<0.000000e+00> : vector<2x128xf32>
    %194 = tpu.matmul %174, %0, %cst_33 {dimension_numbers = #tpu.dot_dimension_numbers<[1], [0], [0], [1], [0, 0, 1, 1], [], []>} : vector<2x32xf32>, vector<32x128xf32>, vector<2x128xf32> -> vector<2x128xf32>
    %195 = arith.addf %193, %194 : vector<2x128xf32>
    %196 = arith.negf %195 : vector<2x128xf32>
    %197 = math.exp %196 : vector<2x128xf32>
    %cst_34 = arith.constant 1.000000e+00 : f32
    %198 = vector.broadcast %cst_34 : f32 to vector<2x128xf32>
    %199 = arith.addf %198, %197 : vector<2x128xf32>
    %200 = arith.divf %198, %199 : vector<2x128xf32>
    %201 = math.tanh %195 : vector<2x128xf32>
    %202 = vector.extract_strided_slice %200 {offsets = [0, 0], sizes = [2, 32], strides = [1, 1]} : vector<2x128xf32> to vector<2x32xf32>
    %203 = vector.extract_strided_slice %200 {offsets = [0, 32], sizes = [2, 32], strides = [1, 1]} : vector<2x128xf32> to vector<2x32xf32>
    %204 = vector.extract_strided_slice %201 {offsets = [0, 64], sizes = [2, 32], strides = [1, 1]} : vector<2x128xf32> to vector<2x32xf32>
    %205 = vector.extract_strided_slice %200 {offsets = [0, 96], sizes = [2, 32], strides = [1, 1]} : vector<2x128xf32> to vector<2x32xf32>
    %206 = arith.mulf %203, %172 : vector<2x32xf32>
    %207 = arith.mulf %202, %204 : vector<2x32xf32>
    %208 = arith.addf %206, %207 : vector<2x32xf32>
    %209 = math.tanh %208 : vector<2x32xf32>
    %210 = arith.mulf %205, %209 : vector<2x32xf32>
    %211 = tpu.concatenate %210, %192 in 1 : vector<2x32xf32>, vector<2x32xf32> -> vector<2x64xf32>
    %cst_35 = arith.constant dense<0.000000e+00> : vector<2x128xf32>
    %212 = tpu.matmul %211, %1, %cst_35 {dimension_numbers = #tpu.dot_dimension_numbers<[1], [0], [0], [1], [0, 0, 1, 1], [], []>} : vector<2x64xf32>, vector<64x128xf32>, vector<2x128xf32> -> vector<2x128xf32>
    %213 = arith.addf %212, %4 : vector<2x128xf32>
    %214 = arith.negf %213 : vector<2x128xf32>
    %215 = math.exp %214 : vector<2x128xf32>
    %cst_36 = arith.constant 1.000000e+00 : f32
    %216 = vector.broadcast %cst_36 : f32 to vector<2x128xf32>
    %217 = arith.addf %216, %215 : vector<2x128xf32>
    %218 = arith.divf %216, %217 : vector<2x128xf32>
    %219 = math.tanh %213 : vector<2x128xf32>
    %220 = vector.extract_strided_slice %218 {offsets = [0, 0], sizes = [2, 32], strides = [1, 1]} : vector<2x128xf32> to vector<2x32xf32>
    %221 = vector.extract_strided_slice %218 {offsets = [0, 32], sizes = [2, 32], strides = [1, 1]} : vector<2x128xf32> to vector<2x32xf32>
    %222 = vector.extract_strided_slice %219 {offsets = [0, 64], sizes = [2, 32], strides = [1, 1]} : vector<2x128xf32> to vector<2x32xf32>
    %223 = vector.extract_strided_slice %218 {offsets = [0, 96], sizes = [2, 32], strides = [1, 1]} : vector<2x128xf32> to vector<2x32xf32>
    %224 = arith.mulf %221, %190 : vector<2x32xf32>
    %225 = arith.mulf %220, %222 : vector<2x32xf32>
    %226 = arith.addf %224, %225 : vector<2x32xf32>
    %227 = math.tanh %226 : vector<2x32xf32>
    %228 = arith.mulf %223, %227 : vector<2x32xf32>
    %229 = vector.extract_strided_slice %11 {offsets = [12, 0], sizes = [2, 128], strides = [1, 1]} : vector<16x128xf32> to vector<2x128xf32>
    %cst_37 = arith.constant dense<0.000000e+00> : vector<2x128xf32>
    %230 = tpu.matmul %210, %0, %cst_37 {dimension_numbers = #tpu.dot_dimension_numbers<[1], [0], [0], [1], [0, 0, 1, 1], [], []>} : vector<2x32xf32>, vector<32x128xf32>, vector<2x128xf32> -> vector<2x128xf32>
    %231 = arith.addf %229, %230 : vector<2x128xf32>
    %232 = arith.negf %231 : vector<2x128xf32>
    %233 = math.exp %232 : vector<2x128xf32>
    %cst_38 = arith.constant 1.000000e+00 : f32
    %234 = vector.broadcast %cst_38 : f32 to vector<2x128xf32>
    %235 = arith.addf %234, %233 : vector<2x128xf32>
    %236 = arith.divf %234, %235 : vector<2x128xf32>
    %237 = math.tanh %231 : vector<2x128xf32>
    %238 = vector.extract_strided_slice %236 {offsets = [0, 0], sizes = [2, 32], strides = [1, 1]} : vector<2x128xf32> to vector<2x32xf32>
    %239 = vector.extract_strided_slice %236 {offsets = [0, 32], sizes = [2, 32], strides = [1, 1]} : vector<2x128xf32> to vector<2x32xf32>
    %240 = vector.extract_strided_slice %237 {offsets = [0, 64], sizes = [2, 32], strides = [1, 1]} : vector<2x128xf32> to vector<2x32xf32>
    %241 = vector.extract_strided_slice %236 {offsets = [0, 96], sizes = [2, 32], strides = [1, 1]} : vector<2x128xf32> to vector<2x32xf32>
    %242 = arith.mulf %239, %208 : vector<2x32xf32>
    %243 = arith.mulf %238, %240 : vector<2x32xf32>
    %244 = arith.addf %242, %243 : vector<2x32xf32>
    %245 = math.tanh %244 : vector<2x32xf32>
    %246 = arith.mulf %241, %245 : vector<2x32xf32>
    %247 = tpu.concatenate %246, %228 in 1 : vector<2x32xf32>, vector<2x32xf32> -> vector<2x64xf32>
    %cst_39 = arith.constant dense<0.000000e+00> : vector<2x128xf32>
    %248 = tpu.matmul %247, %1, %cst_39 {dimension_numbers = #tpu.dot_dimension_numbers<[1], [0], [0], [1], [0, 0, 1, 1], [], []>} : vector<2x64xf32>, vector<64x128xf32>, vector<2x128xf32> -> vector<2x128xf32>
    %249 = arith.addf %248, %4 : vector<2x128xf32>
    %250 = arith.negf %249 : vector<2x128xf32>
    %251 = math.exp %250 : vector<2x128xf32>
    %cst_40 = arith.constant 1.000000e+00 : f32
    %252 = vector.broadcast %cst_40 : f32 to vector<2x128xf32>
    %253 = arith.addf %252, %251 : vector<2x128xf32>
    %254 = arith.divf %252, %253 : vector<2x128xf32>
    %255 = math.tanh %249 : vector<2x128xf32>
    %256 = vector.extract_strided_slice %254 {offsets = [0, 0], sizes = [2, 32], strides = [1, 1]} : vector<2x128xf32> to vector<2x32xf32>
    %257 = vector.extract_strided_slice %254 {offsets = [0, 32], sizes = [2, 32], strides = [1, 1]} : vector<2x128xf32> to vector<2x32xf32>
    %258 = vector.extract_strided_slice %255 {offsets = [0, 64], sizes = [2, 32], strides = [1, 1]} : vector<2x128xf32> to vector<2x32xf32>
    %259 = vector.extract_strided_slice %254 {offsets = [0, 96], sizes = [2, 32], strides = [1, 1]} : vector<2x128xf32> to vector<2x32xf32>
    %260 = arith.mulf %257, %226 : vector<2x32xf32>
    %261 = arith.mulf %256, %258 : vector<2x32xf32>
    %262 = arith.addf %260, %261 : vector<2x32xf32>
    %263 = math.tanh %262 : vector<2x32xf32>
    %264 = arith.mulf %259, %263 : vector<2x32xf32>
    %265 = vector.extract_strided_slice %11 {offsets = [14, 0], sizes = [2, 128], strides = [1, 1]} : vector<16x128xf32> to vector<2x128xf32>
    %cst_41 = arith.constant dense<0.000000e+00> : vector<2x128xf32>
    %266 = tpu.matmul %246, %0, %cst_41 {dimension_numbers = #tpu.dot_dimension_numbers<[1], [0], [0], [1], [0, 0, 1, 1], [], []>} : vector<2x32xf32>, vector<32x128xf32>, vector<2x128xf32> -> vector<2x128xf32>
    %267 = arith.addf %265, %266 : vector<2x128xf32>
    %268 = arith.negf %267 : vector<2x128xf32>
    %269 = math.exp %268 : vector<2x128xf32>
    %cst_42 = arith.constant 1.000000e+00 : f32
    %270 = vector.broadcast %cst_42 : f32 to vector<2x128xf32>
    %271 = arith.addf %270, %269 : vector<2x128xf32>
    %272 = arith.divf %270, %271 : vector<2x128xf32>
    %273 = math.tanh %267 : vector<2x128xf32>
    %274 = vector.extract_strided_slice %272 {offsets = [0, 0], sizes = [2, 32], strides = [1, 1]} : vector<2x128xf32> to vector<2x32xf32>
    %275 = vector.extract_strided_slice %272 {offsets = [0, 32], sizes = [2, 32], strides = [1, 1]} : vector<2x128xf32> to vector<2x32xf32>
    %276 = vector.extract_strided_slice %273 {offsets = [0, 64], sizes = [2, 32], strides = [1, 1]} : vector<2x128xf32> to vector<2x32xf32>
    %277 = vector.extract_strided_slice %272 {offsets = [0, 96], sizes = [2, 32], strides = [1, 1]} : vector<2x128xf32> to vector<2x32xf32>
    %278 = arith.mulf %275, %244 : vector<2x32xf32>
    %279 = arith.mulf %274, %276 : vector<2x32xf32>
    %280 = arith.addf %278, %279 : vector<2x32xf32>
    %281 = math.tanh %280 : vector<2x32xf32>
    %282 = arith.mulf %277, %281 : vector<2x32xf32>
    %283 = tpu.concatenate %282, %264 in 1 : vector<2x32xf32>, vector<2x32xf32> -> vector<2x64xf32>
    %cst_43 = arith.constant dense<0.000000e+00> : vector<2x128xf32>
    %284 = tpu.matmul %283, %1, %cst_43 {dimension_numbers = #tpu.dot_dimension_numbers<[1], [0], [0], [1], [0, 0, 1, 1], [], []>} : vector<2x64xf32>, vector<64x128xf32>, vector<2x128xf32> -> vector<2x128xf32>
    %285 = arith.addf %284, %4 : vector<2x128xf32>
    %286 = arith.negf %285 : vector<2x128xf32>
    %287 = math.exp %286 : vector<2x128xf32>
    %cst_44 = arith.constant 1.000000e+00 : f32
    %288 = vector.broadcast %cst_44 : f32 to vector<2x128xf32>
    %289 = arith.addf %288, %287 : vector<2x128xf32>
    %290 = arith.divf %288, %289 : vector<2x128xf32>
    %291 = math.tanh %285 : vector<2x128xf32>
    %292 = vector.extract_strided_slice %290 {offsets = [0, 0], sizes = [2, 32], strides = [1, 1]} : vector<2x128xf32> to vector<2x32xf32>
    %293 = vector.extract_strided_slice %290 {offsets = [0, 32], sizes = [2, 32], strides = [1, 1]} : vector<2x128xf32> to vector<2x32xf32>
    %294 = vector.extract_strided_slice %291 {offsets = [0, 64], sizes = [2, 32], strides = [1, 1]} : vector<2x128xf32> to vector<2x32xf32>
    %295 = vector.extract_strided_slice %290 {offsets = [0, 96], sizes = [2, 32], strides = [1, 1]} : vector<2x128xf32> to vector<2x32xf32>
    %296 = arith.mulf %293, %262 : vector<2x32xf32>
    %297 = arith.mulf %292, %294 : vector<2x32xf32>
    %298 = arith.addf %296, %297 : vector<2x32xf32>
    %299 = math.tanh %298 : vector<2x32xf32>
    %300 = arith.mulf %295, %299 : vector<2x32xf32>
    %c0_45 = arith.constant 0 : index
    %c0_46 = arith.constant 0 : index
    %301 = vector.load %arg6[%c0_45, %c0_46] : memref<32x16xf32, #tpu.memory_space<vmem>>, vector<32x16xf32>
    %cst_47 = arith.constant dense<0.000000e+00> : vector<2x16xf32>
    %302 = tpu.matmul %300, %301, %cst_47 {dimension_numbers = #tpu.dot_dimension_numbers<[1], [0], [0], [1], [0, 0, 1, 1], [], []>} : vector<2x32xf32>, vector<32x16xf32>, vector<2x16xf32> -> vector<2x16xf32>
    %c0_48 = arith.constant 0 : index
    %c0_49 = arith.constant 0 : index
    %303 = vector.load %arg7[%c0_48, %c0_49] : memref<1x16xf32, #tpu.memory_space<vmem>>, vector<1x16xf32>
    %304 = vector.broadcast %303 : vector<1x16xf32> to vector<2x16xf32>
    %305 = arith.addf %302, %304 : vector<2x16xf32>
    %c0_50 = arith.constant 0 : index
    %c0_51 = arith.constant 0 : index
    %306 = vector.load %arg8[%c0_50, %c0_51] : memref<16x4xf32, #tpu.memory_space<vmem>>, vector<16x4xf32>
    %cst_52 = arith.constant dense<0.000000e+00> : vector<2x4xf32>
    %307 = tpu.matmul %305, %306, %cst_52 {dimension_numbers = #tpu.dot_dimension_numbers<[1], [0], [0], [1], [0, 0, 1, 1], [], []>} : vector<2x16xf32>, vector<16x4xf32>, vector<2x4xf32> -> vector<2x4xf32>
    %c0_53 = arith.constant 0 : index
    %c0_54 = arith.constant 0 : index
    %308 = vector.load %arg9[%c0_53, %c0_54] : memref<1x4xf32, #tpu.memory_space<vmem>>, vector<1x4xf32>
    %309 = vector.broadcast %308 : vector<1x4xf32> to vector<2x4xf32>
    %310 = arith.addf %307, %309 : vector<2x4xf32>
    %c0_55 = arith.constant 0 : index
    %c0_56 = arith.constant 0 : index
    %311 = vector.load %arg10[%c0_55, %c0_56] : memref<2x4xf32, #tpu.memory_space<vmem>>, vector<2x4xf32>
    tpu.vector_store %arg10[%c0_55, %c0_56], %310 {strides = array<i32>} : memref<2x4xf32, #tpu.memory_space<vmem>>, vector<2x4xf32>,
    return
  }
}

</mosaic_0001>

<llo_original>
// kernel: tpu_custom_call.1
$region0: #{tpu_custom_call.1}
  #allocation0 [shape = 'u32[]', space=smem, size = 0x4, offset = 0x4, fixed_abs, tag = 'smem constant byte address 0x4 - core index']
  #allocation1 [shape = 'u32[144,128]{1,0:T(1,128)}', space=vmem, size = 0x12000, scoped, tag = 'internal scratch']
  %s0 = inlined_call_operand.hbm [shape: f32[8,2,16], index: 0, kind: input, shape index: {}]
  %s1 = inlined_call_operand.hbm [shape: f32[16,128], index: 1, kind: input, shape index: {}]
  %s2 = inlined_call_operand.hbm [shape: f32[32,128], index: 2, kind: input, shape index: {}]
  %s3 = inlined_call_operand.vmem [shape: f32[1,128], index: 3, kind: input, shape index: {}]
  %s4 = inlined_call_operand.vmem [shape: f32[64,128], index: 4, kind: input, shape index: {}]
  %s5 = inlined_call_operand.vmem [shape: f32[1,128], index: 5, kind: input, shape index: {}]
  %s6 = inlined_call_operand.vmem [shape: f32[32,16], index: 6, kind: input, shape index: {}]
  %s7 = inlined_call_operand.vmem [shape: f32[1,16], index: 7, kind: input, shape index: {}]
  %s8 = inlined_call_operand.vmem [shape: f32[16,4], index: 8, kind: input, shape index: {}]
  %s9 = inlined_call_operand.vmem [shape: f32[1,4], index: 9, kind: input, shape index: {}]
  %s10 = inlined_call_operand.hbm [shape: f32[2,4], index: 10, kind: output, shape index: {}]
  %s11 = sld [smem:[#allocation0]]
  $region62: #{tpu_custom_call.1} parent=0
    _
  %s13 = ssub.s32 1, %s11
  %s14 = scalar_select 0, %s13, %s11
  $region1: #{tpu_custom_call.1} parent=0
    #allocation2 [shape = 'u8[8192]{0}', space=vmem, size = 0x2000, scoped, tag = 'input window, operand 0, single buffered']
    #allocation3 [shape = 's32[1]{0}', space=sflag, size = 0x4, scoped, tag = 'scoped memory for tpu_custom_call.1']
    #allocation4 [shape = 's32[1]{0}', space=sflag, size = 0x4, scoped, tag = 'scoped memory for tpu_custom_call.1']
    #allocation5 [shape = 'u8[8192]{0}', space=vmem, size = 0x2000, scoped, tag = 'input window, operand 1, single buffered']
    #allocation6 [shape = 's32[1]{0}', space=sflag, size = 0x4, scoped, tag = 'scoped memory for tpu_custom_call.1']
    #allocation7 [shape = 'u8[16384]{0}', space=vmem, size = 0x4000, scoped, tag = 'input window, operand 2, single buffered']
    #allocation8 [shape = 'u8[1024]{0}', space=vmem, size = 0x400, scoped, tag = 'output window, operand 0, single buffered']
    %15 = vsyncpa [#allocation3], 0
    %16 = vsyncpa [#allocation6], 0
    %17 = vsyncpa [#allocation4], 0
    // Predicated region
    $region2: #{tpu_custom_call.1} parent=1 // pred_check
      _
    $region3: #{tpu_custom_call.1} parent=1 // pred_check_branch
      %19 = sbr.rel (0) target = $region5
    $region4: #{tpu_custom_call.1} parent=1 // pred_region
      %s21 = ssub.s32 256, 256
      %22 = vsyncadd [#allocation3], %s21
      %s23 = sshll.u32 [#allocation2], 4
      %s24 = int_to_ptr.vmem [resolvable:$true] %s23
      %29 = dma.hbm_to_vmem [thread:$0]  %s0, 256, %s24, [#allocation3], 32, 32, 2
    $region5: #{tpu_custom_call.1} parent=1 // pred_fallthru
      _
    // Predicated region
    $region6: #{tpu_custom_call.1} parent=1 // pred_check
      _
    $region7: #{tpu_custom_call.1} parent=1 // pred_check_branch
      %31 = sbr.rel (0) target = $region9
    $region8: #{tpu_custom_call.1} parent=1 // pred_region
      %s33 = ssub.s32 256, 256
      %34 = vsyncadd [#allocation6], %s33
      %s35 = sshll.u32 [#allocation5], 4
      %s36 = int_to_ptr.vmem [resolvable:$true] %s35
      %41 = dma.hbm_to_vmem [thread:$0]  %s1, 256, %s36, [#allocation6], 128, 128, 8
    $region9: #{tpu_custom_call.1} parent=1 // pred_fallthru
      _
    // Predicated region
    $region10: #{tpu_custom_call.1} parent=1 // pred_check
      _
    $region11: #{tpu_custom_call.1} parent=1 // pred_check_branch
      %43 = sbr.rel (0) target = $region13
    $region12: #{tpu_custom_call.1} parent=1 // pred_region
      %s45 = ssub.s32 512, 512
      %46 = vsyncadd [#allocation6], %s45
      %s47 = sshll.u32 [#allocation7], 4
      %s48 = int_to_ptr.vmem [resolvable:$true] %s47
      %53 = dma.hbm_to_vmem [thread:$0]  %s2, 512, %s48, [#allocation6], 128, 128, 8
    $region13: #{tpu_custom_call.1} parent=1 // pred_fallthru
      _
    // Predicated region
    $region14: #{tpu_custom_call.1} parent=1 // pred_check
      _
    $region15: #{tpu_custom_call.1} parent=1 // pred_check_branch
      %55 = sbr.rel (0) target = $region17
    $region16: #{tpu_custom_call.1} parent=1 // pred_region
      _
    $region17: #{tpu_custom_call.1} parent=1 // pred_fallthru
      _
    // Predicated region
    $region18: #{tpu_custom_call.1} parent=1 // pred_check
      _
    $region19: #{tpu_custom_call.1} parent=1 // pred_check_branch
      %57 = sbr.rel (0) target = $region21
    $region20: #{tpu_custom_call.1} parent=1 // pred_region
      _
    $region21: #{tpu_custom_call.1} parent=1 // pred_fallthru
      _
    // Predicated region
    $region22: #{tpu_custom_call.1} parent=1 // pred_check
      _
    $region23: #{tpu_custom_call.1} parent=1 // pred_check_branch
      %59 = sbr.rel (0) target = $region25
    $region24: #{tpu_custom_call.1} parent=1 // pred_region
      _
    $region25: #{tpu_custom_call.1} parent=1 // pred_fallthru
      _
    // Predicated region
    $region26: #{tpu_custom_call.1} parent=1 // pred_check
      _
    $region27: #{tpu_custom_call.1} parent=1 // pred_check_branch
      %61 = sbr.rel (0) target = $region29
    $region28: #{tpu_custom_call.1} parent=1 // pred_region
      _
    $region29: #{tpu_custom_call.1} parent=1 // pred_fallthru
      _
    // Predicated region
    $region30: #{tpu_custom_call.1} parent=1 // pred_check
      _
    $region31: #{tpu_custom_call.1} parent=1 // pred_check_branch
      %63 = sbr.rel (0) target = $region33
    $region32: #{tpu_custom_call.1} parent=1 // pred_region
      _
    $region33: #{tpu_custom_call.1} parent=1 // pred_fallthru
      _
    // Predicated region
    $region34: #{tpu_custom_call.1} parent=1 // pred_check
      _
    $region35: #{tpu_custom_call.1} parent=1 // pred_check_branch
      %65 = sbr.rel (0) target = $region37
    $region36: #{tpu_custom_call.1} parent=1 // pred_region
      _
    $region37: #{tpu_custom_call.1} parent=1 // pred_fallthru
      _
    // Predicated region
    $region38: #{tpu_custom_call.1} parent=1 // pred_check
      _
    $region39: #{tpu_custom_call.1} parent=1 // pred_check_branch
      %67 = sbr.rel (0) target = $region41
    $region40: #{tpu_custom_call.1} parent=1 // pred_region
      _
    $region41: #{tpu_custom_call.1} parent=1 // pred_fallthru
      _
    // Predicated region
    $region42: #{tpu_custom_call.1} parent=1 // pred_check
      _
    $region43: #{tpu_custom_call.1} parent=1 // pred_check_branch
      %69 = sbr.rel (0) target = $region45
    $region44: #{tpu_custom_call.1} parent=1 // pred_region
      %70 = dma.done [#allocation3], 256
    $region45: #{tpu_custom_call.1} parent=1 // pred_fallthru
      _
    // Predicated region
    $region46: #{tpu_custom_call.1} parent=1 // pred_check
      _
    $region47: #{tpu_custom_call.1} parent=1 // pred_check_branch
      %72 = sbr.rel (0) target = $region49
    $region48: #{tpu_custom_call.1} parent=1 // pred_region
      %73 = dma.done [#allocation6], 256
    $region49: #{tpu_custom_call.1} parent=1 // pred_fallthru
      _
    // Predicated region
    $region50: #{tpu_custom_call.1} parent=1 // pred_check
      _
    $region51: #{tpu_custom_call.1} parent=1 // pred_check_branch
      %75 = sbr.rel (0) target = $region53
    $region52: #{tpu_custom_call.1} parent=1 // pred_region
      %76 = dma.done [#allocation6], 512
    $region53: #{tpu_custom_call.1} parent=1 // pred_fallthru
      _
    %v77 = vld [vmem:[#allocation7] sm:$0xff]
    %v78 = vld [vmem:[#allocation7 + $0x8] sm:$0xff]
    %v79 = vld [vmem:[#allocation7 + $0x10] sm:$0xff]
    %v80 = vld [vmem:[#allocation7 + $0x18] sm:$0xff]
    %v81 = vld [vmem:[%s4] sm:$0xff]
    %v82 = vld [vmem:[%s4 + $0x8] sm:$0xff]
    %v83 = vld [vmem:[%s4 + $0x10] sm:$0xff]
    %v84 = vld [vmem:[%s4 + $0x18] sm:$0xff]
    %v85 = vld [vmem:[%s4 + $0x20] sm:$0xff]
    %v86 = vld [vmem:[%s4 + $0x28] sm:$0xff]
    %v87 = vld [vmem:[%s4 + $0x30] sm:$0xff]
    %v88 = vld [vmem:[%s4 + $0x38] sm:$0xff]
    %v89 = vld [vmem:[%s5] sm:$0x1]
    %v91 = vlaneseq
    %v92 = vshrl.u32 %v91, 7
    %v93 = vsub.s32 0, %v92
    %v94 = vrot.slane %v89, %v93
    %v96 = vld [vmem:[#allocation2] sm:$0x3]
    %v97 = vld [vmem:[#allocation2 + $0x2] sm:$0x3]
    %v98 = vld [vmem:[#allocation2 + $0x4] sm:$0x3]
    %v99 = vld [vmem:[#allocation2 + $0x6] sm:$0x3]
    %v100 = vld [vmem:[#allocation2 + $0x8] sm:$0x3]
    %v101 = vld [vmem:[#allocation2 + $0xa] sm:$0x3]
    %v102 = vld [vmem:[#allocation2 + $0xc] sm:$0x3]
    %v103 = vld [vmem:[#allocation2 + $0xe] sm:$0x3]
    %v104 = vld [vmem:[#allocation5] sm:$0xff]
    %v105 = vld [vmem:[#allocation5 + $0x8] sm:$0xff]
    %v106 = vld [vmem:[%s3] sm:$0x1]
    %v108 = vlaneseq
    %v109 = vshrl.u32 %v108, 7
    %v110 = vsub.s32 0, %v109
    %v111 = vrot.slane %v106, %v110
    %v121 = vcombine.low %v96, %v97
    %v122 = vcombine.low %v98, %v99
    %v124 = vunpack.c.l.s4 1983009808
    %v125 = vunpack.c.0.s8 %v124
    %v126 = vlaneseq
    %v127 = vshrl.u32 %v126, 7
    %v128 = vsub.s32 %v125, %v127
    %v129 = vrot.slane %v121, %v128
    %v131 = vunpack.c.l.s4 1983009808
    %v132 = vunpack.c.0.s8 %v131
    %v133 = vlaneseq
    %v134 = vshrl.u32 %v133, 7
    %v135 = vsub.s32 %v132, %v134
    %v136 = vrot.slane %v122, %v135
    %v137 = vcombine.low %v129, %v136
    %v138 = vcombine.low %v100, %v101
    %v139 = vcombine.low %v102, %v103
    %v141 = vunpack.c.l.s4 1983009808
    %v142 = vunpack.c.0.s8 %v141
    %v143 = vlaneseq
    %v144 = vshrl.u32 %v143, 7
    %v145 = vsub.s32 %v142, %v144
    %v146 = vrot.slane %v138, %v145
    %v148 = vunpack.c.l.s4 1983009808
    %v149 = vunpack.c.0.s8 %v148
    %v150 = vlaneseq
    %v151 = vshrl.u32 %v150, 7
    %v152 = vsub.s32 %v149, %v151
    %v153 = vrot.slane %v139, %v152
    %v154 = vcombine.low %v146, %v153
    %vm155 = vcmask 130048
    %v156 = vsel %vm155, %v137, 0
    %v158 = vsel %vm155, %v154, 0
    %160 = vmatprep.subr.mxu0 0.0
    %161 = vmatpush1.msra.mxu0 %v104
    %162 = vmatprep.subr.mxu0 0.0
    %163 = vmatpush1.msra.mxu0 %v105
    %164 = vmatprep.subr.mxu0 0.0
    %165 = vmatpush1.msra.mxu0 0.0
    %166 = vmatprep.subr.mxu0 0.0
    %167 = vmatpush1.msra.mxu0 0.0
    %168 = vmatprep.subr.mxu0 0.0
    %169 = vmatpush1.msra.mxu0 0.0
    %170 = vmatprep.subr.mxu0 0.0
    %171 = vmatpush1.msra.mxu0 0.0
    %172 = vmatprep.subr.mxu0 0.0
    %173 = vmatpush1.msra.mxu0 0.0
    %174 = vmatprep.subr.mxu0 0.0
    %175 = vmatpush1.msra.mxu0 0.0
    %176 = vmatprep.subr.mxu0 0.0
    %177 = vmatpush1.msra.mxu0 0.0
    %178 = vmatprep.subr.mxu0 0.0
    %179 = vmatpush1.msra.mxu0 0.0
    %180 = vmatprep.subr.mxu0 0.0
    %181 = vmatpush1.msra.mxu0 0.0
    %182 = vmatprep.subr.mxu0 0.0
    %183 = vmatpush1.msra.mxu0 0.0
    %184 = vmatprep.subr.mxu0 0.0
    %185 = vmatpush1.msra.mxu0 0.0
    %186 = vmatprep.subr.mxu0 0.0
    %187 = vmatpush1.msra.mxu0 0.0
    %188 = vmatprep.subr.mxu0 0.0
    %189 = vmatpush1.msra.mxu0 0.0
    %190 = vmatprep.subr.mxu0 0.0
    %191 = vmatpush1.msra.mxu0 0.0
    %192 = vmatprep.subr.mxu0 0.0
    %193 = vmatpush1.msra.mxu0 0.0
    %194 = vmatprep.subr.mxu0 0.0
    %195 = vmatpush1.msra.mxu0 0.0
    %196 = vmatprep.subr.mxu0 0.0
    %197 = vmatpush1.msra.mxu0 0.0
    %198 = vmatprep.subr.mxu0 0.0
    %199 = vmatpush1.msra.mxu0 0.0
    %200 = vmatprep.subr.mxu0 0.0
    %201 = vmatpush1.msra.mxu0 0.0
    %202 = vmatprep.subr.mxu0 0.0
    %203 = vmatpush1.msra.mxu0 0.0
    %204 = vmatprep.subr.mxu0 0.0
    %205 = vmatpush1.msra.mxu0 0.0
    %206 = vmatprep.subr.mxu0 0.0
    %207 = vmatpush1.msra.mxu0 0.0
    %208 = vmatprep.subr.mxu0 0.0
    %209 = vmatpush1.msra.mxu0 0.0
    %210 = vmatprep.subr.mxu0 0.0
    %211 = vmatpush1.msra.mxu0 0.0
    %212 = vmatprep.subr.mxu0 0.0
    %213 = vmatpush1.msra.mxu0 0.0
    %214 = vmatprep.subr.mxu0 0.0
    %215 = vmatpush1.msra.mxu0 0.0
    %216 = vmatprep.subr.mxu0 0.0
    %217 = vmatpush1.msra.mxu0 0.0
    %218 = vmatprep.subr.mxu0 0.0
    %219 = vmatpush1.msra.mxu0 0.0
    %220 = vmatprep.subr.mxu0 0.0
    %221 = vmatpush1.msra.mxu0 0.0
    %222 = vmatprep.subr.mxu0 0.0
    %223 = vmatpush1.msra.mxu0 0.0
    %224 = vmatprep.mubr.f32.mxu0 0.0
    %225 = vmatmul.mubr.f32.gmra.mrb[0].mxu0 %v156
    %v226 = vpop.f32.mrb[0].mxu0
    %v227 = vadd.f32 %v111, %v226
    %v228 = vpop.f32.mrb[0].mxu0
    %229 = vmatprep.mubr.f32.mxu0 0.0
    %230 = vmatmul.mubr.f32.gmra.mrb[0].mxu0 %v158
    %v231 = vpop.f32.mrb[0].mxu0
    %v232 = vadd.f32 %v111, %v231
    %v233 = vpop.f32.mrb[0].mxu0
    %234 = vdwg.mxu0
    %vm235 = vcmask 261120
    %v237 = vsel %vm235, 0.0, 0
    %239 = vmatprep.subr.mxu0 0.0
    %240 = vmatpush1.msra.mxu0 %v77
    %241 = vmatprep.subr.mxu0 0.0
    %242 = vmatpush1.msra.mxu0 %v78
    %243 = vmatprep.subr.mxu0 0.0
    %244 = vmatpush1.msra.mxu0 %v79
    %245 = vmatprep.subr.mxu0 0.0
    %246 = vmatpush1.msra.mxu0 %v80
    %247 = vmatprep.subr.mxu0 0.0
    %248 = vmatpush1.msra.mxu0 0.0
    %249 = vmatprep.subr.mxu0 0.0
    %250 = vmatpush1.msra.mxu0 0.0
    %251 = vmatprep.subr.mxu0 0.0
    %252 = vmatpush1.msra.mxu0 0.0
    %253 = vmatprep.subr.mxu0 0.0
    %254 = vmatpush1.msra.mxu0 0.0
    %255 = vmatprep.subr.mxu0 0.0
    %256 = vmatpush1.msra.mxu0 0.0
    %257 = vmatprep.subr.mxu0 0.0
    %258 = vmatpush1.msra.mxu0 0.0
    %259 = vmatprep.subr.mxu0 0.0
    %260 = vmatpush1.msra.mxu0 0.0
    %261 = vmatprep.subr.mxu0 0.0
    %262 = vmatpush1.msra.mxu0 0.0
    %263 = vmatprep.subr.mxu0 0.0
    %264 = vmatpush1.msra.mxu0 0.0
    %265 = vmatprep.subr.mxu0 0.0
    %266 = vmatpush1.msra.mxu0 0.0
    %267 = vmatprep.subr.mxu0 0.0
    %268 = vmatpush1.msra.mxu0 0.0
    %269 = vmatprep.subr.mxu0 0.0
    %270 = vmatpush1.msra.mxu0 0.0
    %271 = vmatprep.subr.mxu0 0.0
    %272 = vmatpush1.msra.mxu0 0.0
    %273 = vmatprep.subr.mxu0 0.0
    %274 = vmatpush1.msra.mxu0 0.0
    %275 = vmatprep.subr.mxu0 0.0
    %276 = vmatpush1.msra.mxu0 0.0
    %277 = vmatprep.subr.mxu0 0.0
    %278 = vmatpush1.msra.mxu0 0.0
    %279 = vmatprep.subr.mxu0 0.0
    %280 = vmatpush1.msra.mxu0 0.0
    %281 = vmatprep.subr.mxu0 0.0
    %282 = vmatpush1.msra.mxu0 0.0
    %283 = vmatprep.subr.mxu0 0.0
    %284 = vmatpush1.msra.mxu0 0.0
    %285 = vmatprep.subr.mxu0 0.0
    %286 = vmatpush1.msra.mxu0 0.0
    %287 = vmatprep.subr.mxu0 0.0
    %288 = vmatpush1.msra.mxu0 0.0
    %289 = vmatprep.subr.mxu0 0.0
    %290 = vmatpush1.msra.mxu0 0.0
    %291 = vmatprep.subr.mxu0 0.0
    %292 = vmatpush1.msra.mxu0 0.0
    %293 = vmatprep.subr.mxu0 0.0
    %294 = vmatpush1.msra.mxu0 0.0
    %295 = vmatprep.subr.mxu0 0.0
    %296 = vmatpush1.msra.mxu0 0.0
    %297 = vmatprep.subr.mxu0 0.0
    %298 = vmatpush1.msra.mxu0 0.0
    %299 = vmatprep.subr.mxu0 0.0
    %300 = vmatpush1.msra.mxu0 0.0
    %301 = vmatprep.subr.mxu0 0.0
    %302 = vmatpush1.msra.mxu0 0.0
    %303 = vmatprep.mubr.f32.mxu0 0.0
    %304 = vmatmul.mubr.f32.gmra.mrb[0].mxu0 %v237
    %v305 = vpop.f32.mrb[0].mxu0
    %v306 = vadd.f32 0.0, %v305
    %v307 = vpop.f32.mrb[0].mxu0
    %308 = vdwg.mxu0
    %v309 = vadd.f32 %v227, %v306
    %v310 = vxor.u32 %v309, 2147483648
    %v311 = vmul.f32 %v310, 1.442695
    %v312 = vpow.pop %v311
    %v313 = vadd.f32 %v312, 1.0
    %v314 = vrcp.pop %v313
    %v315 = vmul.f32 1.0, %v314
    %v316 = vtanh.pop %v309
    %v317 = vmul.f32 %v315, 0.0
    %319 = vrot.lane.b32.xlu0 %v316, 64
    %v320 = vpop.permute.xlu0 %319
    %v322 = vmul.f32 %v315, %v320
    %324 = vrot.lane.b32.xlu0 %v322, 32
    %v325 = vpop.permute.xlu0 %324
    %v327 = vadd.f32 %v317, %v325
    %v328 = vtanh.pop %v327
    %330 = vrot.lane.b32.xlu0 %v328, 64
    %v331 = vpop.permute.xlu0 %330
    %v333 = vmul.f32 %v315, %v331
    %335 = vrot.lane.b32.xlu0 %v333, 32
    %v336 = vpop.permute.xlu0 %335
    %v338 = vsel %vm235, %v336, 0.0
    %vm339 = vcmask 523264
    %v341 = vsel %vm339, %v338, 0
    %343 = vmatprep.subr.mxu0 0.0
    %344 = vmatpush1.msra.mxu0 %v81
    %345 = vmatprep.subr.mxu0 0.0
    %346 = vmatpush1.msra.mxu0 %v82
    %347 = vmatprep.subr.mxu0 0.0
    %348 = vmatpush1.msra.mxu0 %v83
    %349 = vmatprep.subr.mxu0 0.0
    %350 = vmatpush1.msra.mxu0 %v84
    %351 = vmatprep.subr.mxu0 0.0
    %352 = vmatpush1.msra.mxu0 %v85
    %353 = vmatprep.subr.mxu0 0.0
    %354 = vmatpush1.msra.mxu0 %v86
    %355 = vmatprep.subr.mxu0 0.0
    %356 = vmatpush1.msra.mxu0 %v87
    %357 = vmatprep.subr.mxu0 0.0
    %358 = vmatpush1.msra.mxu0 %v88
    %359 = vmatprep.subr.mxu0 0.0
    %360 = vmatpush1.msra.mxu0 0.0
    %361 = vmatprep.subr.mxu0 0.0
    %362 = vmatpush1.msra.mxu0 0.0
    %363 = vmatprep.subr.mxu0 0.0
    %364 = vmatpush1.msra.mxu0 0.0
    %365 = vmatprep.subr.mxu0 0.0
    %366 = vmatpush1.msra.mxu0 0.0
    %367 = vmatprep.subr.mxu0 0.0
    %368 = vmatpush1.msra.mxu0 0.0
    %369 = vmatprep.subr.mxu0 0.0
    %370 = vmatpush1.msra.mxu0 0.0
    %371 = vmatprep.subr.mxu0 0.0
    %372 = vmatpush1.msra.mxu0 0.0
    %373 = vmatprep.subr.mxu0 0.0
    %374 = vmatpush1.msra.mxu0 0.0
    %375 = vmatprep.subr.mxu0 0.0
    %376 = vmatpush1.msra.mxu0 0.0
    %377 = vmatprep.subr.mxu0 0.0
    %378 = vmatpush1.msra.mxu0 0.0
    %379 = vmatprep.subr.mxu0 0.0
    %380 = vmatpush1.msra.mxu0 0.0
    %381 = vmatprep.subr.mxu0 0.0
    %382 = vmatpush1.msra.mxu0 0.0
    %383 = vmatprep.subr.mxu0 0.0
    %384 = vmatpush1.msra.mxu0 0.0
    %385 = vmatprep.subr.mxu0 0.0
    %386 = vmatpush1.msra.mxu0 0.0
    %387 = vmatprep.subr.mxu0 0.0
    %388 = vmatpush1.msra.mxu0 0.0
    %389 = vmatprep.subr.mxu0 0.0
    %390 = vmatpush1.msra.mxu0 0.0
    %391 = vmatprep.subr.mxu0 0.0
    %392 = vmatpush1.msra.mxu0 0.0
    %393 = vmatprep.subr.mxu0 0.0
    %394 = vmatpush1.msra.mxu0 0.0
    %395 = vmatprep.subr.mxu0 0.0
    %396 = vmatpush1.msra.mxu0 0.0
    %397 = vmatprep.subr.mxu0 0.0
    %398 = vmatpush1.msra.mxu0 0.0
    %399 = vmatprep.subr.mxu0 0.0
    %400 = vmatpush1.msra.mxu0 0.0
    %401 = vmatprep.subr.mxu0 0.0
    %402 = vmatpush1.msra.mxu0 0.0
    %403 = vmatprep.subr.mxu0 0.0
    %404 = vmatpush1.msra.mxu0 0.0
    %405 = vmatprep.subr.mxu0 0.0
    %406 = vmatpush1.msra.mxu0 0.0
    %407 = vmatprep.mubr.f32.mxu0 0.0
    %408 = vmatmul.mubr.f32.gmra.mrb[0].mxu0 %v341
    %v409 = vpop.f32.mrb[0].mxu0
    %v410 = vadd.f32 %v94, %v409
    %v411 = vpop.f32.mrb[0].mxu0
    %412 = vdwg.mxu0
    %v413 = vxor.u32 %v410, 2147483648
    %v414 = vmul.f32 %v413, 1.442695
    %v415 = vpow.pop %v414
    %v416 = vadd.f32 %v415, 1.0
    %v417 = vrcp.pop %v416
    %v418 = vmul.f32 1.0, %v417
    %v419 = vtanh.pop %v410
    %v420 = vmul.f32 %v418, 0.0
    %422 = vrot.lane.b32.xlu0 %v419, 64
    %v423 = vpop.permute.xlu0 %422
    %v425 = vmul.f32 %v418, %v423
    %427 = vrot.lane.b32.xlu0 %v425, 32
    %v428 = vpop.permute.xlu0 %427
    %v430 = vadd.f32 %v420, %v428
    %v431 = vtanh.pop %v430
    %433 = vrot.lane.b32.xlu0 %v431, 64
    %v434 = vpop.permute.xlu0 %433
    %v436 = vmul.f32 %v418, %v434
    %v437 = vsel %vm235, %v336, 0
    %439 = vmatprep.subr.mxu0 0.0
    %440 = vmatpush1.msra.mxu0 %v77
    %441 = vmatprep.subr.mxu0 0.0
    %442 = vmatpush1.msra.mxu0 %v78
    %443 = vmatprep.subr.mxu0 0.0
    %444 = vmatpush1.msra.mxu0 %v79
    %445 = vmatprep.subr.mxu0 0.0
    %446 = vmatpush1.msra.mxu0 %v80
    %447 = vmatprep.subr.mxu0 0.0
    %448 = vmatpush1.msra.mxu0 0.0
    %449 = vmatprep.subr.mxu0 0.0
    %450 = vmatpush1.msra.mxu0 0.0
    %451 = vmatprep.subr.mxu0 0.0
    %452 = vmatpush1.msra.mxu0 0.0
    %453 = vmatprep.subr.mxu0 0.0
    %454 = vmatpush1.msra.mxu0 0.0
    %455 = vmatprep.subr.mxu0 0.0
    %456 = vmatpush1.msra.mxu0 0.0
    %457 = vmatprep.subr.mxu0 0.0
    %458 = vmatpush1.msra.mxu0 0.0
    %459 = vmatprep.subr.mxu0 0.0
    %460 = vmatpush1.msra.mxu0 0.0
    %461 = vmatprep.subr.mxu0 0.0
    %462 = vmatpush1.msra.mxu0 0.0
    %463 = vmatprep.subr.mxu0 0.0
    %464 = vmatpush1.msra.mxu0 0.0
    %465 = vmatprep.subr.mxu0 0.0
    %466 = vmatpush1.msra.mxu0 0.0
    %467 = vmatprep.subr.mxu0 0.0
    %468 = vmatpush1.msra.mxu0 0.0
    %469 = vmatprep.subr.mxu0 0.0
    %470 = vmatpush1.msra.mxu0 0.0
    %471 = vmatprep.subr.mxu0 0.0
    %472 = vmatpush1.msra.mxu0 0.0
    %473 = vmatprep.subr.mxu0 0.0
    %474 = vmatpush1.msra.mxu0 0.0
    %475 = vmatprep.subr.mxu0 0.0
    %476 = vmatpush1.msra.mxu0 0.0
    %477 = vmatprep.subr.mxu0 0.0
    %478 = vmatpush1.msra.mxu0 0.0
    %479 = vmatprep.subr.mxu0 0.0
    %480 = vmatpush1.msra.mxu0 0.0
    %481 = vmatprep.subr.mxu0 0.0
    %482 = vmatpush1.msra.mxu0 0.0
    %483 = vmatprep.subr.mxu0 0.0
    %484 = vmatpush1.msra.mxu0 0.0
    %485 = vmatprep.subr.mxu0 0.0
    %486 = vmatpush1.msra.mxu0 0.0
    %487 = vmatprep.subr.mxu0 0.0
    %488 = vmatpush1.msra.mxu0 0.0
    %489 = vmatprep.subr.mxu0 0.0
    %490 = vmatpush1.msra.mxu0 0.0
    %491 = vmatprep.subr.mxu0 0.0
    %492 = vmatpush1.msra.mxu0 0.0
    %493 = vmatprep.subr.mxu0 0.0
    %494 = vmatpush1.msra.mxu0 0.0
    %495 = vmatprep.subr.mxu0 0.0
    %496 = vmatpush1.msra.mxu0 0.0
    %497 = vmatprep.subr.mxu0 0.0
    %498 = vmatpush1.msra.mxu0 0.0
    %499 = vmatprep.subr.mxu0 0.0
    %500 = vmatpush1.msra.mxu0 0.0
    %501 = vmatprep.subr.mxu0 0.0
    %502 = vmatpush1.msra.mxu0 0.0
    %503 = vmatprep.mubr.f32.mxu0 0.0
    %504 = vmatmul.mubr.f32.gmra.mrb[0].mxu0 %v437
    %v505 = vpop.f32.mrb[0].mxu0
    %v506 = vadd.f32 0.0, %v505
    %v507 = vpop.f32.mrb[0].mxu0
    %508 = vdwg.mxu0
    %v510 = vrot.slane %v506, 6
    %v512 = vadd.f32 %v227, %v510
    %v513 = vxor.u32 %v512, 2147483648
    %v514 = vmul.f32 %v513, 1.442695
    %v515 = vpow.pop %v514
    %v516 = vadd.f32 %v515, 1.0
    %v517 = vrcp.pop %v516
    %v518 = vmul.f32 1.0, %v517
    %v519 = vtanh.pop %v512
    %v521 = vrot.slane %v327, 6
    %v523 = vmul.f32 %v518, %v521
    %525 = vrot.lane.b32.xlu0 %v519, 64
    %v526 = vpop.permute.xlu0 %525
    %v528 = vmul.f32 %v518, %v526
    %530 = vrot.lane.b32.xlu0 %v528, 32
    %v531 = vpop.permute.xlu0 %530
    %v533 = vadd.f32 %v523, %v531
    %v534 = vtanh.pop %v533
    %536 = vrot.lane.b32.xlu0 %v534, 64
    %v537 = vpop.permute.xlu0 %536
    %v539 = vmul.f32 %v518, %v537
    %541 = vrot.lane.b32.xlu0 %v539, 32
    %v542 = vpop.permute.xlu0 %541
    %v545 = vrot.slane %v436, 6
    %546 = vrot.lane.b32.xlu0 %v545, 64
    %v547 = vpop.permute.xlu0 %546
    %v549 = vsel %vm235, %v542, %v547
    %v551 = vrot.slane %v549, 2
    %v552 = vsel %vm339, %v551, 0
    %554 = vmatprep.subr.mxu0 0.0
    %555 = vmatpush1.msra.mxu0 %v81
    %556 = vmatprep.subr.mxu0 0.0
    %557 = vmatpush1.msra.mxu0 %v82
    %558 = vmatprep.subr.mxu0 0.0
    %559 = vmatpush1.msra.mxu0 %v83
    %560 = vmatprep.subr.mxu0 0.0
    %561 = vmatpush1.msra.mxu0 %v84
    %562 = vmatprep.subr.mxu0 0.0
    %563 = vmatpush1.msra.mxu0 %v85
    %564 = vmatprep.subr.mxu0 0.0
    %565 = vmatpush1.msra.mxu0 %v86
    %566 = vmatprep.subr.mxu0 0.0
    %567 = vmatpush1.msra.mxu0 %v87
    %568 = vmatprep.subr.mxu0 0.0
    %569 = vmatpush1.msra.mxu0 %v88
    %570 = vmatprep.subr.mxu0 0.0
    %571 = vmatpush1.msra.mxu0 0.0
    %572 = vmatprep.subr.mxu0 0.0
    %573 = vmatpush1.msra.mxu0 0.0
    %574 = vmatprep.subr.mxu0 0.0
    %575 = vmatpush1.msra.mxu0 0.0
    %576 = vmatprep.subr.mxu0 0.0
    %577 = vmatpush1.msra.mxu0 0.0
    %578 = vmatprep.subr.mxu0 0.0
    %579 = vmatpush1.msra.mxu0 0.0
    %580 = vmatprep.subr.mxu0 0.0
    %581 = vmatpush1.msra.mxu0 0.0
    %582 = vmatprep.subr.mxu0 0.0
    %583 = vmatpush1.msra.mxu0 0.0
    %584 = vmatprep.subr.mxu0 0.0
    %585 = vmatpush1.msra.mxu0 0.0
    %586 = vmatprep.subr.mxu0 0.0
    %587 = vmatpush1.msra.mxu0 0.0
    %588 = vmatprep.subr.mxu0 0.0
    %589 = vmatpush1.msra.mxu0 0.0
    %590 = vmatprep.subr.mxu0 0.0
    %591 = vmatpush1.msra.mxu0 0.0
    %592 = vmatprep.subr.mxu0 0.0
    %593 = vmatpush1.msra.mxu0 0.0
    %594 = vmatprep.subr.mxu0 0.0
    %595 = vmatpush1.msra.mxu0 0.0
    %596 = vmatprep.subr.mxu0 0.0
    %597 = vmatpush1.msra.mxu0 0.0
    %598 = vmatprep.subr.mxu0 0.0
    %599 = vmatpush1.msra.mxu0 0.0
    %600 = vmatprep.subr.mxu0 0.0
    %601 = vmatpush1.msra.mxu0 0.0
    %602 = vmatprep.subr.mxu0 0.0
    %603 = vmatpush1.msra.mxu0 0.0
    %604 = vmatprep.subr.mxu0 0.0
    %605 = vmatpush1.msra.mxu0 0.0
    %606 = vmatprep.subr.mxu0 0.0
    %607 = vmatpush1.msra.mxu0 0.0
    %608 = vmatprep.subr.mxu0 0.0
    %609 = vmatpush1.msra.mxu0 0.0
    %610 = vmatprep.subr.mxu0 0.0
    %611 = vmatpush1.msra.mxu0 0.0
    %612 = vmatprep.subr.mxu0 0.0
    %613 = vmatpush1.msra.mxu0 0.0
    %614 = vmatprep.subr.mxu0 0.0
    %615 = vmatpush1.msra.mxu0 0.0
    %616 = vmatprep.subr.mxu0 0.0
    %617 = vmatpush1.msra.mxu0 0.0
    %618 = vmatprep.mubr.f32.mxu0 0.0
    %619 = vmatmul.mubr.f32.gmra.mrb[0].mxu0 %v552
    %v620 = vpop.f32.mrb[0].mxu0
    %v621 = vadd.f32 %v94, %v620
    %v622 = vpop.f32.mrb[0].mxu0
    %623 = vdwg.mxu0
    %v624 = vxor.u32 %v621, 2147483648
    %v625 = vmul.f32 %v624, 1.442695
    %v626 = vpow.pop %v625
    %v627 = vadd.f32 %v626, 1.0
    %v628 = vrcp.pop %v627
    %v629 = vmul.f32 1.0, %v628
    %v630 = vtanh.pop %v621
    %v631 = vmul.f32 %v629, %v430
    %633 = vrot.lane.b32.xlu0 %v630, 64
    %v634 = vpop.permute.xlu0 %633
    %v636 = vmul.f32 %v629, %v634
    %638 = vrot.lane.b32.xlu0 %v636, 32
    %v639 = vpop.permute.xlu0 %638
    %v641 = vadd.f32 %v631, %v639
    %v642 = vtanh.pop %v641
    %644 = vrot.lane.b32.xlu0 %v642, 64
    %v645 = vpop.permute.xlu0 %644
    %v647 = vmul.f32 %v629, %v645
    %v648 = vrot.slane %v539, 2
    %649 = vrot.lane.b32.xlu0 %v648, 32
    %v650 = vpop.permute.xlu0 %649
    %v651 = vsel %vm235, %v650, 0
    %653 = vmatprep.subr.mxu0 0.0
    %654 = vmatpush1.msra.mxu0 %v77
    %655 = vmatprep.subr.mxu0 0.0
    %656 = vmatpush1.msra.mxu0 %v78
    %657 = vmatprep.subr.mxu0 0.0
    %658 = vmatpush1.msra.mxu0 %v79
    %659 = vmatprep.subr.mxu0 0.0
    %660 = vmatpush1.msra.mxu0 %v80
    %661 = vmatprep.subr.mxu0 0.0
    %662 = vmatpush1.msra.mxu0 0.0
    %663 = vmatprep.subr.mxu0 0.0
    %664 = vmatpush1.msra.mxu0 0.0
    %665 = vmatprep.subr.mxu0 0.0
    %666 = vmatpush1.msra.mxu0 0.0
    %667 = vmatprep.subr.mxu0 0.0
    %668 = vmatpush1.msra.mxu0 0.0
    %669 = vmatprep.subr.mxu0 0.0
    %670 = vmatpush1.msra.mxu0 0.0
    %671 = vmatprep.subr.mxu0 0.0
    %672 = vmatpush1.msra.mxu0 0.0
    %673 = vmatprep.subr.mxu0 0.0
    %674 = vmatpush1.msra.mxu0 0.0
    %675 = vmatprep.subr.mxu0 0.0
    %676 = vmatpush1.msra.mxu0 0.0
    %677 = vmatprep.subr.mxu0 0.0
    %678 = vmatpush1.msra.mxu0 0.0
    %679 = vmatprep.subr.mxu0 0.0
    %680 = vmatpush1.msra.mxu0 0.0
    %681 = vmatprep.subr.mxu0 0.0
    %682 = vmatpush1.msra.mxu0 0.0
    %683 = vmatprep.subr.mxu0 0.0
    %684 = vmatpush1.msra.mxu0 0.0
    %685 = vmatprep.subr.mxu0 0.0
    %686 = vmatpush1.msra.mxu0 0.0
    %687 = vmatprep.subr.mxu0 0.0
    %688 = vmatpush1.msra.mxu0 0.0
    %689 = vmatprep.subr.mxu0 0.0
    %690 = vmatpush1.msra.mxu0 0.0
    %691 = vmatprep.subr.mxu0 0.0
    %692 = vmatpush1.msra.mxu0 0.0
    %693 = vmatprep.subr.mxu0 0.0
    %694 = vmatpush1.msra.mxu0 0.0
    %695 = vmatprep.subr.mxu0 0.0
    %696 = vmatpush1.msra.mxu0 0.0
    %697 = vmatprep.subr.mxu0 0.0
    %698 = vmatpush1.msra.mxu0 0.0
    %699 = vmatprep.subr.mxu0 0.0
    %700 = vmatpush1.msra.mxu0 0.0
    %701 = vmatprep.subr.mxu0 0.0
    %702 = vmatpush1.msra.mxu0 0.0
    %703 = vmatprep.subr.mxu0 0.0
    %704 = vmatpush1.msra.mxu0 0.0
    %705 = vmatprep.subr.mxu0 0.0
    %706 = vmatpush1.msra.mxu0 0.0
    %707 = vmatprep.subr.mxu0 0.0
    %708 = vmatpush1.msra.mxu0 0.0
    %709 = vmatprep.subr.mxu0 0.0
    %710 = vmatpush1.msra.mxu0 0.0
    %711 = vmatprep.subr.mxu0 0.0
    %712 = vmatpush1.msra.mxu0 0.0
    %713 = vmatprep.subr.mxu0 0.0
    %714 = vmatpush1.msra.mxu0 0.0
    %715 = vmatprep.subr.mxu0 0.0
    %716 = vmatpush1.msra.mxu0 0.0
    %717 = vmatprep.mubr.f32.mxu0 0.0
    %718 = vmatmul.mubr.f32.gmra.mrb[0].mxu0 %v651
    %v719 = vpop.f32.mrb[0].mxu0
    %v720 = vadd.f32 0.0, %v719
    %v721 = vpop.f32.mrb[0].mxu0
    %722 = vdwg.mxu0
    %v724 = vrot.slane %v720, 4
    %v726 = vadd.f32 %v227, %v724
    %v727 = vxor.u32 %v726, 2147483648
    %v728 = vmul.f32 %v727, 1.442695
    %v729 = vpow.pop %v728
    %v730 = vadd.f32 %v729, 1.0
    %v731 = vrcp.pop %v730
    %v732 = vmul.f32 1.0, %v731
    %v733 = vtanh.pop %v726
    %v735 = vrot.slane %v533, 6
    %v737 = vmul.f32 %v732, %v735
    %739 = vrot.lane.b32.xlu0 %v733, 64
    %v740 = vpop.permute.xlu0 %739
    %v742 = vmul.f32 %v732, %v740
    %744 = vrot.lane.b32.xlu0 %v742, 32
    %v745 = vpop.permute.xlu0 %744
    %v747 = vadd.f32 %v737, %v745
    %v748 = vtanh.pop %v747
    %750 = vrot.lane.b32.xlu0 %v748, 64
    %v751 = vpop.permute.xlu0 %750
    %v753 = vmul.f32 %v732, %v751
    %755 = vrot.lane.b32.xlu0 %v753, 32
    %v756 = vpop.permute.xlu0 %755
    %v759 = vrot.slane %v647, 4
    %760 = vrot.lane.b32.xlu0 %v759, 64
    %v761 = vpop.permute.xlu0 %760
    %v763 = vsel %vm235, %v756, %v761
    %v765 = vrot.slane %v763, 4
    %v766 = vsel %vm339, %v765, 0
    %768 = vmatprep.subr.mxu0 0.0
    %769 = vmatpush1.msra.mxu0 %v81
    %770 = vmatprep.subr.mxu0 0.0
    %771 = vmatpush1.msra.mxu0 %v82
    %772 = vmatprep.subr.mxu0 0.0
    %773 = vmatpush1.msra.mxu0 %v83
    %774 = vmatprep.subr.mxu0 0.0
    %775 = vmatpush1.msra.mxu0 %v84
    %776 = vmatprep.subr.mxu0 0.0
    %777 = vmatpush1.msra.mxu0 %v85
    %778 = vmatprep.subr.mxu0 0.0
    %779 = vmatpush1.msra.mxu0 %v86
    %780 = vmatprep.subr.mxu0 0.0
    %781 = vmatpush1.msra.mxu0 %v87
    %782 = vmatprep.subr.mxu0 0.0
    %783 = vmatpush1.msra.mxu0 %v88
    %784 = vmatprep.subr.mxu0 0.0
    %785 = vmatpush1.msra.mxu0 0.0
    %786 = vmatprep.subr.mxu0 0.0
    %787 = vmatpush1.msra.mxu0 0.0
    %788 = vmatprep.subr.mxu0 0.0
    %789 = vmatpush1.msra.mxu0 0.0
    %790 = vmatprep.subr.mxu0 0.0
    %791 = vmatpush1.msra.mxu0 0.0
    %792 = vmatprep.subr.mxu0 0.0
    %793 = vmatpush1.msra.mxu0 0.0
    %794 = vmatprep.subr.mxu0 0.0
    %795 = vmatpush1.msra.mxu0 0.0
    %796 = vmatprep.subr.mxu0 0.0
    %797 = vmatpush1.msra.mxu0 0.0
    %798 = vmatprep.subr.mxu0 0.0
    %799 = vmatpush1.msra.mxu0 0.0
    %800 = vmatprep.subr.mxu0 0.0
    %801 = vmatpush1.msra.mxu0 0.0
    %802 = vmatprep.subr.mxu0 0.0
    %803 = vmatpush1.msra.mxu0 0.0
    %804 = vmatprep.subr.mxu0 0.0
    %805 = vmatpush1.msra.mxu0 0.0
    %806 = vmatprep.subr.mxu0 0.0
    %807 = vmatpush1.msra.mxu0 0.0
    %808 = vmatprep.subr.mxu0 0.0
    %809 = vmatpush1.msra.mxu0 0.0
    %810 = vmatprep.subr.mxu0 0.0
    %811 = vmatpush1.msra.mxu0 0.0
    %812 = vmatprep.subr.mxu0 0.0
    %813 = vmatpush1.msra.mxu0 0.0
    %814 = vmatprep.subr.mxu0 0.0
    %815 = vmatpush1.msra.mxu0 0.0
    %816 = vmatprep.subr.mxu0 0.0
    %817 = vmatpush1.msra.mxu0 0.0
    %818 = vmatprep.subr.mxu0 0.0
    %819 = vmatpush1.msra.mxu0 0.0
    %820 = vmatprep.subr.mxu0 0.0
    %821 = vmatpush1.msra.mxu0 0.0
    %822 = vmatprep.subr.mxu0 0.0
    %823 = vmatpush1.msra.mxu0 0.0
    %824 = vmatprep.subr.mxu0 0.0
    %825 = vmatpush1.msra.mxu0 0.0
    %826 = vmatprep.subr.mxu0 0.0
    %827 = vmatpush1.msra.mxu0 0.0
    %828 = vmatprep.subr.mxu0 0.0
    %829 = vmatpush1.msra.mxu0 0.0
    %830 = vmatprep.subr.mxu0 0.0
    %831 = vmatpush1.msra.mxu0 0.0
    %832 = vmatprep.mubr.f32.mxu0 0.0
    %833 = vmatmul.mubr.f32.gmra.mrb[0].mxu0 %v766
    %v834 = vpop.f32.mrb[0].mxu0
    %v835 = vadd.f32 %v94, %v834
    %v836 = vpop.f32.mrb[0].mxu0
    %837 = vdwg.mxu0
    %v838 = vxor.u32 %v835, 2147483648
    %v839 = vmul.f32 %v838, 1.442695
    %v840 = vpow.pop %v839
    %v841 = vadd.f32 %v840, 1.0
    %v842 = vrcp.pop %v841
    %v843 = vmul.f32 1.0, %v842
    %v844 = vtanh.pop %v835
    %v845 = vmul.f32 %v843, %v641
    %847 = vrot.lane.b32.xlu0 %v844, 64
    %v848 = vpop.permute.xlu0 %847
    %v850 = vmul.f32 %v843, %v848
    %852 = vrot.lane.b32.xlu0 %v850, 32
    %v853 = vpop.permute.xlu0 %852
    %v855 = vadd.f32 %v845, %v853
    %v856 = vtanh.pop %v855
    %858 = vrot.lane.b32.xlu0 %v856, 64
    %v859 = vpop.permute.xlu0 %858
    %v861 = vmul.f32 %v843, %v859
    %v862 = vrot.slane %v753, 4
    %863 = vrot.lane.b32.xlu0 %v862, 32
    %v864 = vpop.permute.xlu0 %863
    %v865 = vsel %vm235, %v864, 0
    %867 = vmatprep.subr.mxu0 0.0
    %868 = vmatpush1.msra.mxu0 %v77
    %869 = vmatprep.subr.mxu0 0.0
    %870 = vmatpush1.msra.mxu0 %v78
    %871 = vmatprep.subr.mxu0 0.0
    %872 = vmatpush1.msra.mxu0 %v79
    %873 = vmatprep.subr.mxu0 0.0
    %874 = vmatpush1.msra.mxu0 %v80
    %875 = vmatprep.subr.mxu0 0.0
    %876 = vmatpush1.msra.mxu0 0.0
    %877 = vmatprep.subr.mxu0 0.0
    %878 = vmatpush1.msra.mxu0 0.0
    %879 = vmatprep.subr.mxu0 0.0
    %880 = vmatpush1.msra.mxu0 0.0
    %881 = vmatprep.subr.mxu0 0.0
    %882 = vmatpush1.msra.mxu0 0.0
    %883 = vmatprep.subr.mxu0 0.0
    %884 = vmatpush1.msra.mxu0 0.0
    %885 = vmatprep.subr.mxu0 0.0
    %886 = vmatpush1.msra.mxu0 0.0
    %887 = vmatprep.subr.mxu0 0.0
    %888 = vmatpush1.msra.mxu0 0.0
    %889 = vmatprep.subr.mxu0 0.0
    %890 = vmatpush1.msra.mxu0 0.0
    %891 = vmatprep.subr.mxu0 0.0
    %892 = vmatpush1.msra.mxu0 0.0
    %893 = vmatprep.subr.mxu0 0.0
    %894 = vmatpush1.msra.mxu0 0.0
    %895 = vmatprep.subr.mxu0 0.0
    %896 = vmatpush1.msra.mxu0 0.0
    %897 = vmatprep.subr.mxu0 0.0
    %898 = vmatpush1.msra.mxu0 0.0
    %899 = vmatprep.subr.mxu0 0.0
    %900 = vmatpush1.msra.mxu0 0.0
    %901 = vmatprep.subr.mxu0 0.0
    %902 = vmatpush1.msra.mxu0 0.0
    %903 = vmatprep.subr.mxu0 0.0
    %904 = vmatpush1.msra.mxu0 0.0
    %905 = vmatprep.subr.mxu0 0.0
    %906 = vmatpush1.msra.mxu0 0.0
    %907 = vmatprep.subr.mxu0 0.0
    %908 = vmatpush1.msra.mxu0 0.0
    %909 = vmatprep.subr.mxu0 0.0
    %910 = vmatpush1.msra.mxu0 0.0
    %911 = vmatprep.subr.mxu0 0.0
    %912 = vmatpush1.msra.mxu0 0.0
    %913 = vmatprep.subr.mxu0 0.0
    %914 = vmatpush1.msra.mxu0 0.0
    %915 = vmatprep.subr.mxu0 0.0
    %916 = vmatpush1.msra.mxu0 0.0
    %917 = vmatprep.subr.mxu0 0.0
    %918 = vmatpush1.msra.mxu0 0.0
    %919 = vmatprep.subr.mxu0 0.0
    %920 = vmatpush1.msra.mxu0 0.0
    %921 = vmatprep.subr.mxu0 0.0
    %922 = vmatpush1.msra.mxu0 0.0
    %923 = vmatprep.subr.mxu0 0.0
    %924 = vmatpush1.msra.mxu0 0.0
    %925 = vmatprep.subr.mxu0 0.0
    %926 = vmatpush1.msra.mxu0 0.0
    %927 = vmatprep.subr.mxu0 0.0
    %928 = vmatpush1.msra.mxu0 0.0
    %929 = vmatprep.subr.mxu0 0.0
    %930 = vmatpush1.msra.mxu0 0.0
    %931 = vmatprep.mubr.f32.mxu0 0.0
    %932 = vmatmul.mubr.f32.gmra.mrb[0].mxu0 %v865
    %v933 = vpop.f32.mrb[0].mxu0
    %v934 = vadd.f32 0.0, %v933
    %v935 = vpop.f32.mrb[0].mxu0
    %936 = vdwg.mxu0
    %v938 = vrot.slane %v934, 2
    %v940 = vadd.f32 %v227, %v938
    %v941 = vxor.u32 %v940, 2147483648
    %v942 = vmul.f32 %v941, 1.442695
    %v943 = vpow.pop %v942
    %v944 = vadd.f32 %v943, 1.0
    %v945 = vrcp.pop %v944
    %v946 = vmul.f32 1.0, %v945
    %v947 = vtanh.pop %v940
    %v949 = vrot.slane %v747, 6
    %v951 = vmul.f32 %v946, %v949
    %953 = vrot.lane.b32.xlu0 %v947, 64
    %v954 = vpop.permute.xlu0 %953
    %v956 = vmul.f32 %v946, %v954
    %958 = vrot.lane.b32.xlu0 %v956, 32
    %v959 = vpop.permute.xlu0 %958
    %v961 = vadd.f32 %v951, %v959
    %v962 = vtanh.pop %v961
    %964 = vrot.lane.b32.xlu0 %v962, 64
    %v965 = vpop.permute.xlu0 %964
    %v967 = vmul.f32 %v946, %v965
    %969 = vrot.lane.b32.xlu0 %v967, 32
    %v970 = vpop.permute.xlu0 %969
    %v973 = vrot.slane %v861, 2
    %974 = vrot.lane.b32.xlu0 %v973, 64
    %v975 = vpop.permute.xlu0 %974
    %v977 = vsel %vm235, %v970, %v975
    %v979 = vrot.slane %v977, 6
    %v980 = vsel %vm339, %v979, 0
    %982 = vmatprep.subr.mxu0 0.0
    %983 = vmatpush1.msra.mxu0 %v81
    %984 = vmatprep.subr.mxu0 0.0
    %985 = vmatpush1.msra.mxu0 %v82
    %986 = vmatprep.subr.mxu0 0.0
    %987 = vmatpush1.msra.mxu0 %v83
    %988 = vmatprep.subr.mxu0 0.0
    %989 = vmatpush1.msra.mxu0 %v84
    %990 = vmatprep.subr.mxu0 0.0
    %991 = vmatpush1.msra.mxu0 %v85
    %992 = vmatprep.subr.mxu0 0.0
    %993 = vmatpush1.msra.mxu0 %v86
    %994 = vmatprep.subr.mxu0 0.0
    %995 = vmatpush1.msra.mxu0 %v87
    %996 = vmatprep.subr.mxu0 0.0
    %997 = vmatpush1.msra.mxu0 %v88
    %998 = vmatprep.subr.mxu0 0.0
    %999 = vmatpush1.msra.mxu0 0.0
    %1000 = vmatprep.subr.mxu0 0.0
    %1001 = vmatpush1.msra.mxu0 0.0
    %1002 = vmatprep.subr.mxu0 0.0
    %1003 = vmatpush1.msra.mxu0 0.0
    %1004 = vmatprep.subr.mxu0 0.0
    %1005 = vmatpush1.msra.mxu0 0.0
    %1006 = vmatprep.subr.mxu0 0.0
    %1007 = vmatpush1.msra.mxu0 0.0
    %1008 = vmatprep.subr.mxu0 0.0
    %1009 = vmatpush1.msra.mxu0 0.0
    %1010 = vmatprep.subr.mxu0 0.0
    %1011 = vmatpush1.msra.mxu0 0.0
    %1012 = vmatprep.subr.mxu0 0.0
    %1013 = vmatpush1.msra.mxu0 0.0
    %1014 = vmatprep.subr.mxu0 0.0
    %1015 = vmatpush1.msra.mxu0 0.0
    %1016 = vmatprep.subr.mxu0 0.0
    %1017 = vmatpush1.msra.mxu0 0.0
    %1018 = vmatprep.subr.mxu0 0.0
    %1019 = vmatpush1.msra.mxu0 0.0
    %1020 = vmatprep.subr.mxu0 0.0
    %1021 = vmatpush1.msra.mxu0 0.0
    %1022 = vmatprep.subr.mxu0 0.0
    %1023 = vmatpush1.msra.mxu0 0.0
    %1024 = vmatprep.subr.mxu0 0.0
    %1025 = vmatpush1.msra.mxu0 0.0
    %1026 = vmatprep.subr.mxu0 0.0
    %1027 = vmatpush1.msra.mxu0 0.0
    %1028 = vmatprep.subr.mxu0 0.0
    %1029 = vmatpush1.msra.mxu0 0.0
    %1030 = vmatprep.subr.mxu0 0.0
    %1031 = vmatpush1.msra.mxu0 0.0
    %1032 = vmatprep.subr.mxu0 0.0
    %1033 = vmatpush1.msra.mxu0 0.0
    %1034 = vmatprep.subr.mxu0 0.0
    %1035 = vmatpush1.msra.mxu0 0.0
    %1036 = vmatprep.subr.mxu0 0.0
    %1037 = vmatpush1.msra.mxu0 0.0
    %1038 = vmatprep.subr.mxu0 0.0
    %1039 = vmatpush1.msra.mxu0 0.0
    %1040 = vmatprep.subr.mxu0 0.0
    %1041 = vmatpush1.msra.mxu0 0.0
    %1042 = vmatprep.subr.mxu0 0.0
    %1043 = vmatpush1.msra.mxu0 0.0
    %1044 = vmatprep.subr.mxu0 0.0
    %1045 = vmatpush1.msra.mxu0 0.0
    %1046 = vmatprep.mubr.f32.mxu0 0.0
    %1047 = vmatmul.mubr.f32.gmra.mrb[0].mxu0 %v980
    %v1048 = vpop.f32.mrb[0].mxu0
    %v1049 = vadd.f32 %v94, %v1048
    %v1050 = vpop.f32.mrb[0].mxu0
    %1051 = vdwg.mxu0
    %v1052 = vxor.u32 %v1049, 2147483648
    %v1053 = vmul.f32 %v1052, 1.442695
    %v1054 = vpow.pop %v1053
    %v1055 = vadd.f32 %v1054, 1.0
    %v1056 = vrcp.pop %v1055
    %v1057 = vmul.f32 1.0, %v1056
    %v1058 = vtanh.pop %v1049
    %v1059 = vmul.f32 %v1057, %v855
    %1061 = vrot.lane.b32.xlu0 %v1058, 64
    %v1062 = vpop.permute.xlu0 %1061
    %v1064 = vmul.f32 %v1057, %v1062
    %1066 = vrot.lane.b32.xlu0 %v1064, 32
    %v1067 = vpop.permute.xlu0 %1066
    %v1069 = vadd.f32 %v1059, %v1067
    %v1070 = vtanh.pop %v1069
    %1072 = vrot.lane.b32.xlu0 %v1070, 64
    %v1073 = vpop.permute.xlu0 %1072
    %v1075 = vmul.f32 %v1057, %v1073
    %v1076 = vrot.slane %v967, 6
    %1077 = vrot.lane.b32.xlu0 %v1076, 32
    %v1078 = vpop.permute.xlu0 %1077
    %v1079 = vsel %vm235, %v1078, 0
    %1081 = vmatprep.subr.mxu0 0.0
    %1082 = vmatpush1.msra.mxu0 %v77
    %1083 = vmatprep.subr.mxu0 0.0
    %1084 = vmatpush1.msra.mxu0 %v78
    %1085 = vmatprep.subr.mxu0 0.0
    %1086 = vmatpush1.msra.mxu0 %v79
    %1087 = vmatprep.subr.mxu0 0.0
    %1088 = vmatpush1.msra.mxu0 %v80
    %1089 = vmatprep.subr.mxu0 0.0
    %1090 = vmatpush1.msra.mxu0 0.0
    %1091 = vmatprep.subr.mxu0 0.0
    %1092 = vmatpush1.msra.mxu0 0.0
    %1093 = vmatprep.subr.mxu0 0.0
    %1094 = vmatpush1.msra.mxu0 0.0
    %1095 = vmatprep.subr.mxu0 0.0
    %1096 = vmatpush1.msra.mxu0 0.0
    %1097 = vmatprep.subr.mxu0 0.0
    %1098 = vmatpush1.msra.mxu0 0.0
    %1099 = vmatprep.subr.mxu0 0.0
    %1100 = vmatpush1.msra.mxu0 0.0
    %1101 = vmatprep.subr.mxu0 0.0
    %1102 = vmatpush1.msra.mxu0 0.0
    %1103 = vmatprep.subr.mxu0 0.0
    %1104 = vmatpush1.msra.mxu0 0.0
    %1105 = vmatprep.subr.mxu0 0.0
    %1106 = vmatpush1.msra.mxu0 0.0
    %1107 = vmatprep.subr.mxu0 0.0
    %1108 = vmatpush1.msra.mxu0 0.0
    %1109 = vmatprep.subr.mxu0 0.0
    %1110 = vmatpush1.msra.mxu0 0.0
    %1111 = vmatprep.subr.mxu0 0.0
    %1112 = vmatpush1.msra.mxu0 0.0
    %1113 = vmatprep.subr.mxu0 0.0
    %1114 = vmatpush1.msra.mxu0 0.0
    %1115 = vmatprep.subr.mxu0 0.0
    %1116 = vmatpush1.msra.mxu0 0.0
    %1117 = vmatprep.subr.mxu0 0.0
    %1118 = vmatpush1.msra.mxu0 0.0
    %1119 = vmatprep.subr.mxu0 0.0
    %1120 = vmatpush1.msra.mxu0 0.0
    %1121 = vmatprep.subr.mxu0 0.0
    %1122 = vmatpush1.msra.mxu0 0.0
    %1123 = vmatprep.subr.mxu0 0.0
    %1124 = vmatpush1.msra.mxu0 0.0
    %1125 = vmatprep.subr.mxu0 0.0
    %1126 = vmatpush1.msra.mxu0 0.0
    %1127 = vmatprep.subr.mxu0 0.0
    %1128 = vmatpush1.msra.mxu0 0.0
    %1129 = vmatprep.subr.mxu0 0.0
    %1130 = vmatpush1.msra.mxu0 0.0
    %1131 = vmatprep.subr.mxu0 0.0
    %1132 = vmatpush1.msra.mxu0 0.0
    %1133 = vmatprep.subr.mxu0 0.0
    %1134 = vmatpush1.msra.mxu0 0.0
    %1135 = vmatprep.subr.mxu0 0.0
    %1136 = vmatpush1.msra.mxu0 0.0
    %1137 = vmatprep.subr.mxu0 0.0
    %1138 = vmatpush1.msra.mxu0 0.0
    %1139 = vmatprep.subr.mxu0 0.0
    %1140 = vmatpush1.msra.mxu0 0.0
    %1141 = vmatprep.subr.mxu0 0.0
    %1142 = vmatpush1.msra.mxu0 0.0
    %1143 = vmatprep.subr.mxu0 0.0
    %1144 = vmatpush1.msra.mxu0 0.0
    %1145 = vmatprep.mubr.f32.mxu0 0.0
    %1146 = vmatmul.mubr.f32.gmra.mrb[0].mxu0 %v1079
    %v1147 = vpop.f32.mrb[0].mxu0
    %v1148 = vadd.f32 0.0, %v1147
    %v1149 = vpop.f32.mrb[0].mxu0
    %1150 = vdwg.mxu0
    %v1151 = vadd.f32 %v232, %v1148
    %v1152 = vxor.u32 %v1151, 2147483648
    %v1153 = vmul.f32 %v1152, 1.442695
    %v1154 = vpow.pop %v1153
    %v1155 = vadd.f32 %v1154, 1.0
    %v1156 = vrcp.pop %v1155
    %v1157 = vmul.f32 1.0, %v1156
    %v1158 = vtanh.pop %v1151
    %v1160 = vrot.slane %v961, 6
    %v1162 = vmul.f32 %v1157, %v1160
    %1164 = vrot.lane.b32.xlu0 %v1158, 64
    %v1165 = vpop.permute.xlu0 %1164
    %v1167 = vmul.f32 %v1157, %v1165
    %1169 = vrot.lane.b32.xlu0 %v1167, 32
    %v1170 = vpop.permute.xlu0 %1169
    %v1172 = vadd.f32 %v1162, %v1170
    %v1173 = vtanh.pop %v1172
    %1175 = vrot.lane.b32.xlu0 %v1173, 64
    %v1176 = vpop.permute.xlu0 %1175
    %v1178 = vmul.f32 %v1157, %v1176
    %1180 = vrot.lane.b32.xlu0 %v1178, 32
    %v1181 = vpop.permute.xlu0 %1180
    %1184 = vrot.lane.b32.xlu0 %v1075, 64
    %v1185 = vpop.permute.xlu0 %1184
    %v1187 = vsel %vm235, %v1181, %v1185
    %v1189 = vsel %vm339, %v1187, 0
    %1191 = vmatprep.subr.mxu0 0.0
    %1192 = vmatpush1.msra.mxu0 %v81
    %1193 = vmatprep.subr.mxu0 0.0
    %1194 = vmatpush1.msra.mxu0 %v82
    %1195 = vmatprep.subr.mxu0 0.0
    %1196 = vmatpush1.msra.mxu0 %v83
    %1197 = vmatprep.subr.mxu0 0.0
    %1198 = vmatpush1.msra.mxu0 %v84
    %1199 = vmatprep.subr.mxu0 0.0
    %1200 = vmatpush1.msra.mxu0 %v85
    %1201 = vmatprep.subr.mxu0 0.0
    %1202 = vmatpush1.msra.mxu0 %v86
    %1203 = vmatprep.subr.mxu0 0.0
    %1204 = vmatpush1.msra.mxu0 %v87
    %1205 = vmatprep.subr.mxu0 0.0
    %1206 = vmatpush1.msra.mxu0 %v88
    %1207 = vmatprep.subr.mxu0 0.0
    %1208 = vmatpush1.msra.mxu0 0.0
    %1209 = vmatprep.subr.mxu0 0.0
    %1210 = vmatpush1.msra.mxu0 0.0
    %1211 = vmatprep.subr.mxu0 0.0
    %1212 = vmatpush1.msra.mxu0 0.0
    %1213 = vmatprep.subr.mxu0 0.0
    %1214 = vmatpush1.msra.mxu0 0.0
    %1215 = vmatprep.subr.mxu0 0.0
    %1216 = vmatpush1.msra.mxu0 0.0
    %1217 = vmatprep.subr.mxu0 0.0
    %1218 = vmatpush1.msra.mxu0 0.0
    %1219 = vmatprep.subr.mxu0 0.0
    %1220 = vmatpush1.msra.mxu0 0.0
    %1221 = vmatprep.subr.mxu0 0.0
    %1222 = vmatpush1.msra.mxu0 0.0
    %1223 = vmatprep.subr.mxu0 0.0
    %1224 = vmatpush1.msra.mxu0 0.0
    %1225 = vmatprep.subr.mxu0 0.0
    %1226 = vmatpush1.msra.mxu0 0.0
    %1227 = vmatprep.subr.mxu0 0.0
    %1228 = vmatpush1.msra.mxu0 0.0
    %1229 = vmatprep.subr.mxu0 0.0
    %1230 = vmatpush1.msra.mxu0 0.0
    %1231 = vmatprep.subr.mxu0 0.0
    %1232 = vmatpush1.msra.mxu0 0.0
    %1233 = vmatprep.subr.mxu0 0.0
    %1234 = vmatpush1.msra.mxu0 0.0
    %1235 = vmatprep.subr.mxu0 0.0
    %1236 = vmatpush1.msra.mxu0 0.0
    %1237 = vmatprep.subr.mxu0 0.0
    %1238 = vmatpush1.msra.mxu0 0.0
    %1239 = vmatprep.subr.mxu0 0.0
    %1240 = vmatpush1.msra.mxu0 0.0
    %1241 = vmatprep.subr.mxu0 0.0
    %1242 = vmatpush1.msra.mxu0 0.0
    %1243 = vmatprep.subr.mxu0 0.0
    %1244 = vmatpush1.msra.mxu0 0.0
    %1245 = vmatprep.subr.mxu0 0.0
    %1246 = vmatpush1.msra.mxu0 0.0
    %1247 = vmatprep.subr.mxu0 0.0
    %1248 = vmatpush1.msra.mxu0 0.0
    %1249 = vmatprep.subr.mxu0 0.0
    %1250 = vmatpush1.msra.mxu0 0.0
    %1251 = vmatprep.subr.mxu0 0.0
    %1252 = vmatpush1.msra.mxu0 0.0
    %1253 = vmatprep.subr.mxu0 0.0
    %1254 = vmatpush1.msra.mxu0 0.0
    %1255 = vmatprep.mubr.f32.mxu0 0.0
    %1256 = vmatmul.mubr.f32.gmra.mrb[0].mxu0 %v1189
    %v1257 = vpop.f32.mrb[0].mxu0
    %v1258 = vadd.f32 %v94, %v1257
    %v1259 = vpop.f32.mrb[0].mxu0
    %1260 = vdwg.mxu0
    %v1261 = vxor.u32 %v1258, 2147483648
    %v1262 = vmul.f32 %v1261, 1.442695
    %v1263 = vpow.pop %v1262
    %v1264 = vadd.f32 %v1263, 1.0
    %v1265 = vrcp.pop %v1264
    %v1266 = vmul.f32 1.0, %v1265
    %v1267 = vtanh.pop %v1258
    %v1268 = vmul.f32 %v1266, %v1069
    %1270 = vrot.lane.b32.xlu0 %v1267, 64
    %v1271 = vpop.permute.xlu0 %1270
    %v1273 = vmul.f32 %v1266, %v1271
    %1275 = vrot.lane.b32.xlu0 %v1273, 32
    %v1276 = vpop.permute.xlu0 %1275
    %v1278 = vadd.f32 %v1268, %v1276
    %v1279 = vtanh.pop %v1278
    %1281 = vrot.lane.b32.xlu0 %v1279, 64
    %v1282 = vpop.permute.xlu0 %1281
    %v1284 = vmul.f32 %v1266, %v1282
    %v1285 = vsel %vm235, %v1181, 0
    %1287 = vmatprep.subr.mxu0 0.0
    %1288 = vmatpush1.msra.mxu0 %v77
    %1289 = vmatprep.subr.mxu0 0.0
    %1290 = vmatpush1.msra.mxu0 %v78
    %1291 = vmatprep.subr.mxu0 0.0
    %1292 = vmatpush1.msra.mxu0 %v79
    %1293 = vmatprep.subr.mxu0 0.0
    %1294 = vmatpush1.msra.mxu0 %v80
    %1295 = vmatprep.subr.mxu0 0.0
    %1296 = vmatpush1.msra.mxu0 0.0
    %1297 = vmatprep.subr.mxu0 0.0
    %1298 = vmatpush1.msra.mxu0 0.0
    %1299 = vmatprep.subr.mxu0 0.0
    %1300 = vmatpush1.msra.mxu0 0.0
    %1301 = vmatprep.subr.mxu0 0.0
    %1302 = vmatpush1.msra.mxu0 0.0
    %1303 = vmatprep.subr.mxu0 0.0
    %1304 = vmatpush1.msra.mxu0 0.0
    %1305 = vmatprep.subr.mxu0 0.0
    %1306 = vmatpush1.msra.mxu0 0.0
    %1307 = vmatprep.subr.mxu0 0.0
    %1308 = vmatpush1.msra.mxu0 0.0
    %1309 = vmatprep.subr.mxu0 0.0
    %1310 = vmatpush1.msra.mxu0 0.0
    %1311 = vmatprep.subr.mxu0 0.0
    %1312 = vmatpush1.msra.mxu0 0.0
    %1313 = vmatprep.subr.mxu0 0.0
    %1314 = vmatpush1.msra.mxu0 0.0
    %1315 = vmatprep.subr.mxu0 0.0
    %1316 = vmatpush1.msra.mxu0 0.0
    %1317 = vmatprep.subr.mxu0 0.0
    %1318 = vmatpush1.msra.mxu0 0.0
    %1319 = vmatprep.subr.mxu0 0.0
    %1320 = vmatpush1.msra.mxu0 0.0
    %1321 = vmatprep.subr.mxu0 0.0
    %1322 = vmatpush1.msra.mxu0 0.0
    %1323 = vmatprep.subr.mxu0 0.0
    %1324 = vmatpush1.msra.mxu0 0.0
    %1325 = vmatprep.subr.mxu0 0.0
    %1326 = vmatpush1.msra.mxu0 0.0
    %1327 = vmatprep.subr.mxu0 0.0
    %1328 = vmatpush1.msra.mxu0 0.0
    %1329 = vmatprep.subr.mxu0 0.0
    %1330 = vmatpush1.msra.mxu0 0.0
    %1331 = vmatprep.subr.mxu0 0.0
    %1332 = vmatpush1.msra.mxu0 0.0
    %1333 = vmatprep.subr.mxu0 0.0
    %1334 = vmatpush1.msra.mxu0 0.0
    %1335 = vmatprep.subr.mxu0 0.0
    %1336 = vmatpush1.msra.mxu0 0.0
    %1337 = vmatprep.subr.mxu0 0.0
    %1338 = vmatpush1.msra.mxu0 0.0
    %1339 = vmatprep.subr.mxu0 0.0
    %1340 = vmatpush1.msra.mxu0 0.0
    %1341 = vmatprep.subr.mxu0 0.0
    %1342 = vmatpush1.msra.mxu0 0.0
    %1343 = vmatprep.subr.mxu0 0.0
    %1344 = vmatpush1.msra.mxu0 0.0
    %1345 = vmatprep.subr.mxu0 0.0
    %1346 = vmatpush1.msra.mxu0 0.0
    %1347 = vmatprep.subr.mxu0 0.0
    %1348 = vmatpush1.msra.mxu0 0.0
    %1349 = vmatprep.subr.mxu0 0.0
    %1350 = vmatpush1.msra.mxu0 0.0
    %1351 = vmatprep.mubr.f32.mxu0 0.0
    %1352 = vmatmul.mubr.f32.gmra.mrb[0].mxu0 %v1285
    %v1353 = vpop.f32.mrb[0].mxu0
    %v1354 = vadd.f32 0.0, %v1353
    %v1355 = vpop.f32.mrb[0].mxu0
    %1356 = vdwg.mxu0
    %v1358 = vrot.slane %v1354, 6
    %v1360 = vadd.f32 %v232, %v1358
    %v1361 = vxor.u32 %v1360, 2147483648
    %v1362 = vmul.f32 %v1361, 1.442695
    %v1363 = vpow.pop %v1362
    %v1364 = vadd.f32 %v1363, 1.0
    %v1365 = vrcp.pop %v1364
    %v1366 = vmul.f32 1.0, %v1365
    %v1367 = vtanh.pop %v1360
    %v1369 = vrot.slane %v1172, 6
    %v1371 = vmul.f32 %v1366, %v1369
    %1373 = vrot.lane.b32.xlu0 %v1367, 64
    %v1374 = vpop.permute.xlu0 %1373
    %v1376 = vmul.f32 %v1366, %v1374
    %1378 = vrot.lane.b32.xlu0 %v1376, 32
    %v1379 = vpop.permute.xlu0 %1378
    %v1381 = vadd.f32 %v1371, %v1379
    %v1382 = vtanh.pop %v1381
    %1384 = vrot.lane.b32.xlu0 %v1382, 64
    %v1385 = vpop.permute.xlu0 %1384
    %v1387 = vmul.f32 %v1366, %v1385
    %1389 = vrot.lane.b32.xlu0 %v1387, 32
    %v1390 = vpop.permute.xlu0 %1389
    %v1393 = vrot.slane %v1284, 6
    %1394 = vrot.lane.b32.xlu0 %v1393, 64
    %v1395 = vpop.permute.xlu0 %1394
    %v1397 = vsel %vm235, %v1390, %v1395
    %v1399 = vrot.slane %v1397, 2
    %v1400 = vsel %vm339, %v1399, 0
    %1402 = vmatprep.subr.mxu0 0.0
    %1403 = vmatpush1.msra.mxu0 %v81
    %1404 = vmatprep.subr.mxu0 0.0
    %1405 = vmatpush1.msra.mxu0 %v82
    %1406 = vmatprep.subr.mxu0 0.0
    %1407 = vmatpush1.msra.mxu0 %v83
    %1408 = vmatprep.subr.mxu0 0.0
    %1409 = vmatpush1.msra.mxu0 %v84
    %1410 = vmatprep.subr.mxu0 0.0
    %1411 = vmatpush1.msra.mxu0 %v85
    %1412 = vmatprep.subr.mxu0 0.0
    %1413 = vmatpush1.msra.mxu0 %v86
    %1414 = vmatprep.subr.mxu0 0.0
    %1415 = vmatpush1.msra.mxu0 %v87
    %1416 = vmatprep.subr.mxu0 0.0
    %1417 = vmatpush1.msra.mxu0 %v88
    %1418 = vmatprep.subr.mxu0 0.0
    %1419 = vmatpush1.msra.mxu0 0.0
    %1420 = vmatprep.subr.mxu0 0.0
    %1421 = vmatpush1.msra.mxu0 0.0
    %1422 = vmatprep.subr.mxu0 0.0
    %1423 = vmatpush1.msra.mxu0 0.0
    %1424 = vmatprep.subr.mxu0 0.0
    %1425 = vmatpush1.msra.mxu0 0.0
    %1426 = vmatprep.subr.mxu0 0.0
    %1427 = vmatpush1.msra.mxu0 0.0
    %1428 = vmatprep.subr.mxu0 0.0
    %1429 = vmatpush1.msra.mxu0 0.0
    %1430 = vmatprep.subr.mxu0 0.0
    %1431 = vmatpush1.msra.mxu0 0.0
    %1432 = vmatprep.subr.mxu0 0.0
    %1433 = vmatpush1.msra.mxu0 0.0
    %1434 = vmatprep.subr.mxu0 0.0
    %1435 = vmatpush1.msra.mxu0 0.0
    %1436 = vmatprep.subr.mxu0 0.0
    %1437 = vmatpush1.msra.mxu0 0.0
    %1438 = vmatprep.subr.mxu0 0.0
    %1439 = vmatpush1.msra.mxu0 0.0
    %1440 = vmatprep.subr.mxu0 0.0
    %1441 = vmatpush1.msra.mxu0 0.0
    %1442 = vmatprep.subr.mxu0 0.0
    %1443 = vmatpush1.msra.mxu0 0.0
    %1444 = vmatprep.subr.mxu0 0.0
    %1445 = vmatpush1.msra.mxu0 0.0
    %1446 = vmatprep.subr.mxu0 0.0
    %1447 = vmatpush1.msra.mxu0 0.0
    %1448 = vmatprep.subr.mxu0 0.0
    %1449 = vmatpush1.msra.mxu0 0.0
    %1450 = vmatprep.subr.mxu0 0.0
    %1451 = vmatpush1.msra.mxu0 0.0
    %1452 = vmatprep.subr.mxu0 0.0
    %1453 = vmatpush1.msra.mxu0 0.0
    %1454 = vmatprep.subr.mxu0 0.0
    %1455 = vmatpush1.msra.mxu0 0.0
    %1456 = vmatprep.subr.mxu0 0.0
    %1457 = vmatpush1.msra.mxu0 0.0
    %1458 = vmatprep.subr.mxu0 0.0
    %1459 = vmatpush1.msra.mxu0 0.0
    %1460 = vmatprep.subr.mxu0 0.0
    %1461 = vmatpush1.msra.mxu0 0.0
    %1462 = vmatprep.subr.mxu0 0.0
    %1463 = vmatpush1.msra.mxu0 0.0
    %1464 = vmatprep.subr.mxu0 0.0
    %1465 = vmatpush1.msra.mxu0 0.0
    %1466 = vmatprep.mubr.f32.mxu0 0.0
    %1467 = vmatmul.mubr.f32.gmra.mrb[0].mxu0 %v1400
    %v1468 = vpop.f32.mrb[0].mxu0
    %v1469 = vadd.f32 %v94, %v1468
    %v1470 = vpop.f32.mrb[0].mxu0
    %1471 = vdwg.mxu0
    %v1472 = vxor.u32 %v1469, 2147483648
    %v1473 = vmul.f32 %v1472, 1.442695
    %v1474 = vpow.pop %v1473
    %v1475 = vadd.f32 %v1474, 1.0
    %v1476 = vrcp.pop %v1475
    %v1477 = vmul.f32 1.0, %v1476
    %v1478 = vtanh.pop %v1469
    %v1479 = vmul.f32 %v1477, %v1278
    %1481 = vrot.lane.b32.xlu0 %v1478, 64
    %v1482 = vpop.permute.xlu0 %1481
    %v1484 = vmul.f32 %v1477, %v1482
    %1486 = vrot.lane.b32.xlu0 %v1484, 32
    %v1487 = vpop.permute.xlu0 %1486
    %v1489 = vadd.f32 %v1479, %v1487
    %v1490 = vtanh.pop %v1489
    %1492 = vrot.lane.b32.xlu0 %v1490, 64
    %v1493 = vpop.permute.xlu0 %1492
    %v1495 = vmul.f32 %v1477, %v1493
    %v1496 = vrot.slane %v1387, 2
    %1497 = vrot.lane.b32.xlu0 %v1496, 32
    %v1498 = vpop.permute.xlu0 %1497
    %v1499 = vsel %vm235, %v1498, 0
    %1501 = vmatprep.subr.mxu0 0.0
    %1502 = vmatpush1.msra.mxu0 %v77
    %1503 = vmatprep.subr.mxu0 0.0
    %1504 = vmatpush1.msra.mxu0 %v78
    %1505 = vmatprep.subr.mxu0 0.0
    %1506 = vmatpush1.msra.mxu0 %v79
    %1507 = vmatprep.subr.mxu0 0.0
    %1508 = vmatpush1.msra.mxu0 %v80
    %1509 = vmatprep.subr.mxu0 0.0
    %1510 = vmatpush1.msra.mxu0 0.0
    %1511 = vmatprep.subr.mxu0 0.0
    %1512 = vmatpush1.msra.mxu0 0.0
    %1513 = vmatprep.subr.mxu0 0.0
    %1514 = vmatpush1.msra.mxu0 0.0
    %1515 = vmatprep.subr.mxu0 0.0
    %1516 = vmatpush1.msra.mxu0 0.0
    %1517 = vmatprep.subr.mxu0 0.0
    %1518 = vmatpush1.msra.mxu0 0.0
    %1519 = vmatprep.subr.mxu0 0.0
    %1520 = vmatpush1.msra.mxu0 0.0
    %1521 = vmatprep.subr.mxu0 0.0
    %1522 = vmatpush1.msra.mxu0 0.0
    %1523 = vmatprep.subr.mxu0 0.0
    %1524 = vmatpush1.msra.mxu0 0.0
    %1525 = vmatprep.subr.mxu0 0.0
    %1526 = vmatpush1.msra.mxu0 0.0
    %1527 = vmatprep.subr.mxu0 0.0
    %1528 = vmatpush1.msra.mxu0 0.0
    %1529 = vmatprep.subr.mxu0 0.0
    %1530 = vmatpush1.msra.mxu0 0.0
    %1531 = vmatprep.subr.mxu0 0.0
    %1532 = vmatpush1.msra.mxu0 0.0
    %1533 = vmatprep.subr.mxu0 0.0
    %1534 = vmatpush1.msra.mxu0 0.0
    %1535 = vmatprep.subr.mxu0 0.0
    %1536 = vmatpush1.msra.mxu0 0.0
    %1537 = vmatprep.subr.mxu0 0.0
    %1538 = vmatpush1.msra.mxu0 0.0
    %1539 = vmatprep.subr.mxu0 0.0
    %1540 = vmatpush1.msra.mxu0 0.0
    %1541 = vmatprep.subr.mxu0 0.0
    %1542 = vmatpush1.msra.mxu0 0.0
    %1543 = vmatprep.subr.mxu0 0.0
    %1544 = vmatpush1.msra.mxu0 0.0
    %1545 = vmatprep.subr.mxu0 0.0
    %1546 = vmatpush1.msra.mxu0 0.0
    %1547 = vmatprep.subr.mxu0 0.0
    %1548 = vmatpush1.msra.mxu0 0.0
    %1549 = vmatprep.subr.mxu0 0.0
    %1550 = vmatpush1.msra.mxu0 0.0
    %1551 = vmatprep.subr.mxu0 0.0
    %1552 = vmatpush1.msra.mxu0 0.0
    %1553 = vmatprep.subr.mxu0 0.0
    %1554 = vmatpush1.msra.mxu0 0.0
    %1555 = vmatprep.subr.mxu0 0.0
    %1556 = vmatpush1.msra.mxu0 0.0
    %1557 = vmatprep.subr.mxu0 0.0
    %1558 = vmatpush1.msra.mxu0 0.0
    %1559 = vmatprep.subr.mxu0 0.0
    %1560 = vmatpush1.msra.mxu0 0.0
    %1561 = vmatprep.subr.mxu0 0.0
    %1562 = vmatpush1.msra.mxu0 0.0
    %1563 = vmatprep.subr.mxu0 0.0
    %1564 = vmatpush1.msra.mxu0 0.0
    %1565 = vmatprep.mubr.f32.mxu0 0.0
    %1566 = vmatmul.mubr.f32.gmra.mrb[0].mxu0 %v1499
    %v1567 = vpop.f32.mrb[0].mxu0
    %v1568 = vadd.f32 0.0, %v1567
    %v1569 = vpop.f32.mrb[0].mxu0
    %1570 = vdwg.mxu0
    %v1572 = vrot.slane %v1568, 4
    %v1574 = vadd.f32 %v232, %v1572
    %v1575 = vxor.u32 %v1574, 2147483648
    %v1576 = vmul.f32 %v1575, 1.442695
    %v1577 = vpow.pop %v1576
    %v1578 = vadd.f32 %v1577, 1.0
    %v1579 = vrcp.pop %v1578
    %v1580 = vmul.f32 1.0, %v1579
    %v1581 = vtanh.pop %v1574
    %v1583 = vrot.slane %v1381, 6
    %v1585 = vmul.f32 %v1580, %v1583
    %1587 = vrot.lane.b32.xlu0 %v1581, 64
    %v1588 = vpop.permute.xlu0 %1587
    %v1590 = vmul.f32 %v1580, %v1588
    %1592 = vrot.lane.b32.xlu0 %v1590, 32
    %v1593 = vpop.permute.xlu0 %1592
    %v1595 = vadd.f32 %v1585, %v1593
    %v1596 = vtanh.pop %v1595
    %1598 = vrot.lane.b32.xlu0 %v1596, 64
    %v1599 = vpop.permute.xlu0 %1598
    %v1601 = vmul.f32 %v1580, %v1599
    %1603 = vrot.lane.b32.xlu0 %v1601, 32
    %v1604 = vpop.permute.xlu0 %1603
    %v1607 = vrot.slane %v1495, 4
    %1608 = vrot.lane.b32.xlu0 %v1607, 64
    %v1609 = vpop.permute.xlu0 %1608
    %v1611 = vsel %vm235, %v1604, %v1609
    %v1613 = vrot.slane %v1611, 4
    %v1614 = vsel %vm339, %v1613, 0
    %1616 = vmatprep.subr.mxu0 0.0
    %1617 = vmatpush1.msra.mxu0 %v81
    %1618 = vmatprep.subr.mxu0 0.0
    %1619 = vmatpush1.msra.mxu0 %v82
    %1620 = vmatprep.subr.mxu0 0.0
    %1621 = vmatpush1.msra.mxu0 %v83
    %1622 = vmatprep.subr.mxu0 0.0
    %1623 = vmatpush1.msra.mxu0 %v84
    %1624 = vmatprep.subr.mxu0 0.0
    %1625 = vmatpush1.msra.mxu0 %v85
    %1626 = vmatprep.subr.mxu0 0.0
    %1627 = vmatpush1.msra.mxu0 %v86
    %1628 = vmatprep.subr.mxu0 0.0
    %1629 = vmatpush1.msra.mxu0 %v87
    %1630 = vmatprep.subr.mxu0 0.0
    %1631 = vmatpush1.msra.mxu0 %v88
    %1632 = vmatprep.subr.mxu0 0.0
    %1633 = vmatpush1.msra.mxu0 0.0
    %1634 = vmatprep.subr.mxu0 0.0
    %1635 = vmatpush1.msra.mxu0 0.0
    %1636 = vmatprep.subr.mxu0 0.0
    %1637 = vmatpush1.msra.mxu0 0.0
    %1638 = vmatprep.subr.mxu0 0.0
    %1639 = vmatpush1.msra.mxu0 0.0
    %1640 = vmatprep.subr.mxu0 0.0
    %1641 = vmatpush1.msra.mxu0 0.0
    %1642 = vmatprep.subr.mxu0 0.0
    %1643 = vmatpush1.msra.mxu0 0.0
    %1644 = vmatprep.subr.mxu0 0.0
    %1645 = vmatpush1.msra.mxu0 0.0
    %1646 = vmatprep.subr.mxu0 0.0
    %1647 = vmatpush1.msra.mxu0 0.0
    %1648 = vmatprep.subr.mxu0 0.0
    %1649 = vmatpush1.msra.mxu0 0.0
    %1650 = vmatprep.subr.mxu0 0.0
    %1651 = vmatpush1.msra.mxu0 0.0
    %1652 = vmatprep.subr.mxu0 0.0
    %1653 = vmatpush1.msra.mxu0 0.0
    %1654 = vmatprep.subr.mxu0 0.0
    %1655 = vmatpush1.msra.mxu0 0.0
    %1656 = vmatprep.subr.mxu0 0.0
    %1657 = vmatpush1.msra.mxu0 0.0
    %1658 = vmatprep.subr.mxu0 0.0
    %1659 = vmatpush1.msra.mxu0 0.0
    %1660 = vmatprep.subr.mxu0 0.0
    %1661 = vmatpush1.msra.mxu0 0.0
    %1662 = vmatprep.subr.mxu0 0.0
    %1663 = vmatpush1.msra.mxu0 0.0
    %1664 = vmatprep.subr.mxu0 0.0
    %1665 = vmatpush1.msra.mxu0 0.0
    %1666 = vmatprep.subr.mxu0 0.0
    %1667 = vmatpush1.msra.mxu0 0.0
    %1668 = vmatprep.subr.mxu0 0.0
    %1669 = vmatpush1.msra.mxu0 0.0
    %1670 = vmatprep.subr.mxu0 0.0
    %1671 = vmatpush1.msra.mxu0 0.0
    %1672 = vmatprep.subr.mxu0 0.0
    %1673 = vmatpush1.msra.mxu0 0.0
    %1674 = vmatprep.subr.mxu0 0.0
    %1675 = vmatpush1.msra.mxu0 0.0
    %1676 = vmatprep.subr.mxu0 0.0
    %1677 = vmatpush1.msra.mxu0 0.0
    %1678 = vmatprep.subr.mxu0 0.0
    %1679 = vmatpush1.msra.mxu0 0.0
    %1680 = vmatprep.mubr.f32.mxu0 0.0
    %1681 = vmatmul.mubr.f32.gmra.mrb[0].mxu0 %v1614
    %v1682 = vpop.f32.mrb[0].mxu0
    %v1683 = vadd.f32 %v94, %v1682
    %v1684 = vpop.f32.mrb[0].mxu0
    %1685 = vdwg.mxu0
    %v1686 = vxor.u32 %v1683, 2147483648
    %v1687 = vmul.f32 %v1686, 1.442695
    %v1688 = vpow.pop %v1687
    %v1689 = vadd.f32 %v1688, 1.0
    %v1690 = vrcp.pop %v1689
    %v1691 = vmul.f32 1.0, %v1690
    %v1692 = vtanh.pop %v1683
    %v1693 = vmul.f32 %v1691, %v1489
    %1695 = vrot.lane.b32.xlu0 %v1692, 64
    %v1696 = vpop.permute.xlu0 %1695
    %v1698 = vmul.f32 %v1691, %v1696
    %1700 = vrot.lane.b32.xlu0 %v1698, 32
    %v1701 = vpop.permute.xlu0 %1700
    %v1703 = vadd.f32 %v1693, %v1701
    %v1704 = vtanh.pop %v1703
    %1706 = vrot.lane.b32.xlu0 %v1704, 64
    %v1707 = vpop.permute.xlu0 %1706
    %v1709 = vmul.f32 %v1691, %v1707
    %v1710 = vrot.slane %v1601, 4
    %1711 = vrot.lane.b32.xlu0 %v1710, 32
    %v1712 = vpop.permute.xlu0 %1711
    %v1713 = vsel %vm235, %v1712, 0
    %1715 = vmatprep.subr.mxu0 0.0
    %1716 = vmatpush1.msra.mxu0 %v77
    %1717 = vmatprep.subr.mxu0 0.0
    %1718 = vmatpush1.msra.mxu0 %v78
    %1719 = vmatprep.subr.mxu0 0.0
    %1720 = vmatpush1.msra.mxu0 %v79
    %1721 = vmatprep.subr.mxu0 0.0
    %1722 = vmatpush1.msra.mxu0 %v80
    %1723 = vmatprep.subr.mxu0 0.0
    %1724 = vmatpush1.msra.mxu0 0.0
    %1725 = vmatprep.subr.mxu0 0.0
    %1726 = vmatpush1.msra.mxu0 0.0
    %1727 = vmatprep.subr.mxu0 0.0
    %1728 = vmatpush1.msra.mxu0 0.0
    %1729 = vmatprep.subr.mxu0 0.0
    %1730 = vmatpush1.msra.mxu0 0.0
    %1731 = vmatprep.subr.mxu0 0.0
    %1732 = vmatpush1.msra.mxu0 0.0
    %1733 = vmatprep.subr.mxu0 0.0
    %1734 = vmatpush1.msra.mxu0 0.0
    %1735 = vmatprep.subr.mxu0 0.0
    %1736 = vmatpush1.msra.mxu0 0.0
    %1737 = vmatprep.subr.mxu0 0.0
    %1738 = vmatpush1.msra.mxu0 0.0
    %1739 = vmatprep.subr.mxu0 0.0
    %1740 = vmatpush1.msra.mxu0 0.0
    %1741 = vmatprep.subr.mxu0 0.0
    %1742 = vmatpush1.msra.mxu0 0.0
    %1743 = vmatprep.subr.mxu0 0.0
    %1744 = vmatpush1.msra.mxu0 0.0
    %1745 = vmatprep.subr.mxu0 0.0
    %1746 = vmatpush1.msra.mxu0 0.0
    %1747 = vmatprep.subr.mxu0 0.0
    %1748 = vmatpush1.msra.mxu0 0.0
    %1749 = vmatprep.subr.mxu0 0.0
    %1750 = vmatpush1.msra.mxu0 0.0
    %1751 = vmatprep.subr.mxu0 0.0
    %1752 = vmatpush1.msra.mxu0 0.0
    %1753 = vmatprep.subr.mxu0 0.0
    %1754 = vmatpush1.msra.mxu0 0.0
    %1755 = vmatprep.subr.mxu0 0.0
    %1756 = vmatpush1.msra.mxu0 0.0
    %1757 = vmatprep.subr.mxu0 0.0
    %1758 = vmatpush1.msra.mxu0 0.0
    %1759 = vmatprep.subr.mxu0 0.0
    %1760 = vmatpush1.msra.mxu0 0.0
    %1761 = vmatprep.subr.mxu0 0.0
    %1762 = vmatpush1.msra.mxu0 0.0
    %1763 = vmatprep.subr.mxu0 0.0
    %1764 = vmatpush1.msra.mxu0 0.0
    %1765 = vmatprep.subr.mxu0 0.0
    %1766 = vmatpush1.msra.mxu0 0.0
    %1767 = vmatprep.subr.mxu0 0.0
    %1768 = vmatpush1.msra.mxu0 0.0
    %1769 = vmatprep.subr.mxu0 0.0
    %1770 = vmatpush1.msra.mxu0 0.0
    %1771 = vmatprep.subr.mxu0 0.0
    %1772 = vmatpush1.msra.mxu0 0.0
    %1773 = vmatprep.subr.mxu0 0.0
    %1774 = vmatpush1.msra.mxu0 0.0
    %1775 = vmatprep.subr.mxu0 0.0
    %1776 = vmatpush1.msra.mxu0 0.0
    %1777 = vmatprep.subr.mxu0 0.0
    %1778 = vmatpush1.msra.mxu0 0.0
    %1779 = vmatprep.mubr.f32.mxu0 0.0
    %1780 = vmatmul.mubr.f32.gmra.mrb[0].mxu0 %v1713
    %v1781 = vpop.f32.mrb[0].mxu0
    %v1782 = vadd.f32 0.0, %v1781
    %v1783 = vpop.f32.mrb[0].mxu0
    %1784 = vdwg.mxu0
    %v1786 = vrot.slane %v1782, 2
    %v1788 = vadd.f32 %v232, %v1786
    %v1789 = vxor.u32 %v1788, 2147483648
    %v1790 = vmul.f32 %v1789, 1.442695
    %v1791 = vpow.pop %v1790
    %v1792 = vadd.f32 %v1791, 1.0
    %v1793 = vrcp.pop %v1792
    %v1794 = vmul.f32 1.0, %v1793
    %v1795 = vtanh.pop %v1788
    %v1797 = vrot.slane %v1595, 6
    %v1799 = vmul.f32 %v1794, %v1797
    %1801 = vrot.lane.b32.xlu0 %v1795, 64
    %v1802 = vpop.permute.xlu0 %1801
    %v1804 = vmul.f32 %v1794, %v1802
    %1806 = vrot.lane.b32.xlu0 %v1804, 32
    %v1807 = vpop.permute.xlu0 %1806
    %v1809 = vadd.f32 %v1799, %v1807
    %v1810 = vtanh.pop %v1809
    %1812 = vrot.lane.b32.xlu0 %v1810, 64
    %v1813 = vpop.permute.xlu0 %1812
    %v1815 = vmul.f32 %v1794, %v1813
    %1817 = vrot.lane.b32.xlu0 %v1815, 32
    %v1818 = vpop.permute.xlu0 %1817
    %v1821 = vrot.slane %v1709, 2
    %1822 = vrot.lane.b32.xlu0 %v1821, 64
    %v1823 = vpop.permute.xlu0 %1822
    %v1825 = vsel %vm235, %v1818, %v1823
    %v1827 = vrot.slane %v1825, 6
    %v1828 = vsel %vm339, %v1827, 0
    %1830 = vmatprep.subr.mxu0 0.0
    %1831 = vmatpush1.msra.mxu0 %v81
    %1832 = vmatprep.subr.mxu0 0.0
    %1833 = vmatpush1.msra.mxu0 %v82
    %1834 = vmatprep.subr.mxu0 0.0
    %1835 = vmatpush1.msra.mxu0 %v83
    %1836 = vmatprep.subr.mxu0 0.0
    %1837 = vmatpush1.msra.mxu0 %v84
    %1838 = vmatprep.subr.mxu0 0.0
    %1839 = vmatpush1.msra.mxu0 %v85
    %1840 = vmatprep.subr.mxu0 0.0
    %1841 = vmatpush1.msra.mxu0 %v86
    %1842 = vmatprep.subr.mxu0 0.0
    %1843 = vmatpush1.msra.mxu0 %v87
    %1844 = vmatprep.subr.mxu0 0.0
    %1845 = vmatpush1.msra.mxu0 %v88
    %1846 = vmatprep.subr.mxu0 0.0
    %1847 = vmatpush1.msra.mxu0 0.0
    %1848 = vmatprep.subr.mxu0 0.0
    %1849 = vmatpush1.msra.mxu0 0.0
    %1850 = vmatprep.subr.mxu0 0.0
    %1851 = vmatpush1.msra.mxu0 0.0
    %1852 = vmatprep.subr.mxu0 0.0
    %1853 = vmatpush1.msra.mxu0 0.0
    %1854 = vmatprep.subr.mxu0 0.0
    %1855 = vmatpush1.msra.mxu0 0.0
    %1856 = vmatprep.subr.mxu0 0.0
    %1857 = vmatpush1.msra.mxu0 0.0
    %1858 = vmatprep.subr.mxu0 0.0
    %1859 = vmatpush1.msra.mxu0 0.0
    %1860 = vmatprep.subr.mxu0 0.0
    %1861 = vmatpush1.msra.mxu0 0.0
    %1862 = vmatprep.subr.mxu0 0.0
    %1863 = vmatpush1.msra.mxu0 0.0
    %1864 = vmatprep.subr.mxu0 0.0
    %1865 = vmatpush1.msra.mxu0 0.0
    %1866 = vmatprep.subr.mxu0 0.0
    %1867 = vmatpush1.msra.mxu0 0.0
    %1868 = vmatprep.subr.mxu0 0.0
    %1869 = vmatpush1.msra.mxu0 0.0
    %1870 = vmatprep.subr.mxu0 0.0
    %1871 = vmatpush1.msra.mxu0 0.0
    %1872 = vmatprep.subr.mxu0 0.0
    %1873 = vmatpush1.msra.mxu0 0.0
    %1874 = vmatprep.subr.mxu0 0.0
    %1875 = vmatpush1.msra.mxu0 0.0
    %1876 = vmatprep.subr.mxu0 0.0
    %1877 = vmatpush1.msra.mxu0 0.0
    %1878 = vmatprep.subr.mxu0 0.0
    %1879 = vmatpush1.msra.mxu0 0.0
    %1880 = vmatprep.subr.mxu0 0.0
    %1881 = vmatpush1.msra.mxu0 0.0
    %1882 = vmatprep.subr.mxu0 0.0
    %1883 = vmatpush1.msra.mxu0 0.0
    %1884 = vmatprep.subr.mxu0 0.0
    %1885 = vmatpush1.msra.mxu0 0.0
    %1886 = vmatprep.subr.mxu0 0.0
    %1887 = vmatpush1.msra.mxu0 0.0
    %1888 = vmatprep.subr.mxu0 0.0
    %1889 = vmatpush1.msra.mxu0 0.0
    %1890 = vmatprep.subr.mxu0 0.0
    %1891 = vmatpush1.msra.mxu0 0.0
    %1892 = vmatprep.subr.mxu0 0.0
    %1893 = vmatpush1.msra.mxu0 0.0
    %1894 = vmatprep.mubr.f32.mxu0 0.0
    %1895 = vmatmul.mubr.f32.gmra.mrb[0].mxu0 %v1828
    %v1896 = vpop.f32.mrb[0].mxu0
    %v1897 = vadd.f32 %v94, %v1896
    %v1898 = vpop.f32.mrb[0].mxu0
    %1899 = vdwg.mxu0
    %v1900 = vxor.u32 %v1897, 2147483648
    %v1901 = vmul.f32 %v1900, 1.442695
    %v1902 = vpow.pop %v1901
    %v1903 = vadd.f32 %v1902, 1.0
    %v1904 = vrcp.pop %v1903
    %v1905 = vmul.f32 1.0, %v1904
    %v1906 = vtanh.pop %v1897
    %v1907 = vmul.f32 %v1905, %v1703
    %1909 = vrot.lane.b32.xlu0 %v1906, 64
    %v1910 = vpop.permute.xlu0 %1909
    %v1912 = vmul.f32 %v1905, %v1910
    %1914 = vrot.lane.b32.xlu0 %v1912, 32
    %v1915 = vpop.permute.xlu0 %1914
    %v1917 = vadd.f32 %v1907, %v1915
    %v1918 = vtanh.pop %v1917
    %1920 = vrot.lane.b32.xlu0 %v1918, 64
    %v1921 = vpop.permute.xlu0 %1920
    %v1923 = vmul.f32 %v1905, %v1921
    %v1924 = vld [vmem:[%s6] sm:$0xff]
    %v1925 = vld [vmem:[%s6 + $0x8] sm:$0xff]
    %v1926 = vld [vmem:[%s6 + $0x10] sm:$0xff]
    %v1927 = vld [vmem:[%s6 + $0x18] sm:$0xff]
    %v1928 = vld [vmem:[%s7] sm:$0x1]
    %v1930 = vlaneseq
    %v1931 = vshrl.u32 %v1930, 7
    %v1932 = vsub.s32 0, %v1931
    %v1933 = vrot.slane %v1928, %v1932
    %1936 = vrot.lane.b32.xlu0 %v1923, 32
    %v1937 = vpop.permute.xlu0 %1936
    %v1938 = vsel %vm235, %v1937, 0
    %1940 = vmatprep.subr.mxu0 0.0
    %1941 = vmatpush1.msra.mxu0 %v1924
    %1942 = vmatprep.subr.mxu0 0.0
    %1943 = vmatpush1.msra.mxu0 %v1925
    %1944 = vmatprep.subr.mxu0 0.0
    %1945 = vmatpush1.msra.mxu0 %v1926
    %1946 = vmatprep.subr.mxu0 0.0
    %1947 = vmatpush1.msra.mxu0 %v1927
    %1948 = vmatprep.subr.mxu0 0.0
    %1949 = vmatpush1.msra.mxu0 0.0
    %1950 = vmatprep.subr.mxu0 0.0
    %1951 = vmatpush1.msra.mxu0 0.0
    %1952 = vmatprep.subr.mxu0 0.0
    %1953 = vmatpush1.msra.mxu0 0.0
    %1954 = vmatprep.subr.mxu0 0.0
    %1955 = vmatpush1.msra.mxu0 0.0
    %1956 = vmatprep.subr.mxu0 0.0
    %1957 = vmatpush1.msra.mxu0 0.0
    %1958 = vmatprep.subr.mxu0 0.0
    %1959 = vmatpush1.msra.mxu0 0.0
    %1960 = vmatprep.subr.mxu0 0.0
    %1961 = vmatpush1.msra.mxu0 0.0
    %1962 = vmatprep.subr.mxu0 0.0
    %1963 = vmatpush1.msra.mxu0 0.0
    %1964 = vmatprep.subr.mxu0 0.0
    %1965 = vmatpush1.msra.mxu0 0.0
    %1966 = vmatprep.subr.mxu0 0.0
    %1967 = vmatpush1.msra.mxu0 0.0
    %1968 = vmatprep.subr.mxu0 0.0
    %1969 = vmatpush1.msra.mxu0 0.0
    %1970 = vmatprep.subr.mxu0 0.0
    %1971 = vmatpush1.msra.mxu0 0.0
    %1972 = vmatprep.subr.mxu0 0.0
    %1973 = vmatpush1.msra.mxu0 0.0
    %1974 = vmatprep.subr.mxu0 0.0
    %1975 = vmatpush1.msra.mxu0 0.0
    %1976 = vmatprep.subr.mxu0 0.0
    %1977 = vmatpush1.msra.mxu0 0.0
    %1978 = vmatprep.subr.mxu0 0.0
    %1979 = vmatpush1.msra.mxu0 0.0
    %1980 = vmatprep.subr.mxu0 0.0
    %1981 = vmatpush1.msra.mxu0 0.0
    %1982 = vmatprep.subr.mxu0 0.0
    %1983 = vmatpush1.msra.mxu0 0.0
    %1984 = vmatprep.subr.mxu0 0.0
    %1985 = vmatpush1.msra.mxu0 0.0
    %1986 = vmatprep.subr.mxu0 0.0
    %1987 = vmatpush1.msra.mxu0 0.0
    %1988 = vmatprep.subr.mxu0 0.0
    %1989 = vmatpush1.msra.mxu0 0.0
    %1990 = vmatprep.subr.mxu0 0.0
    %1991 = vmatpush1.msra.mxu0 0.0
    %1992 = vmatprep.subr.mxu0 0.0
    %1993 = vmatpush1.msra.mxu0 0.0
    %1994 = vmatprep.subr.mxu0 0.0
    %1995 = vmatpush1.msra.mxu0 0.0
    %1996 = vmatprep.subr.mxu0 0.0
    %1997 = vmatpush1.msra.mxu0 0.0
    %1998 = vmatprep.subr.mxu0 0.0
    %1999 = vmatpush1.msra.mxu0 0.0
    %2000 = vmatprep.subr.mxu0 0.0
    %2001 = vmatpush1.msra.mxu0 0.0
    %2002 = vmatprep.subr.mxu0 0.0
    %2003 = vmatpush1.msra.mxu0 0.0
    %2004 = vmatprep.mubr.f32.mxu0 0.0
    %2005 = vmatmul.mubr.f32.gmra.mrb[0].mxu0 %v1938
    %v2006 = vpop.f32.mrb[0].mxu0
    %v2007 = vadd.f32 %v1933, %v2006
    %v2008 = vpop.f32.mrb[0].mxu0
    %2009 = vdwg.mxu0
    %v2010 = vld [vmem:[%s8] sm:$0xff]
    %v2011 = vld [vmem:[%s8 + $0x8] sm:$0xff]
    %v2012 = vld [vmem:[%s9] sm:$0x1]
    %v2014 = vlaneseq
    %v2015 = vshrl.u32 %v2014, 7
    %v2016 = vsub.s32 0, %v2015
    %v2017 = vrot.slane %v2012, %v2016
    %v2020 = vsel %vm155, %v2007, 0
    %2022 = vmatprep.subr.mxu0 0.0
    %2023 = vmatpush1.msra.mxu0 %v2010
    %2024 = vmatprep.subr.mxu0 0.0
    %2025 = vmatpush1.msra.mxu0 %v2011
    %2026 = vmatprep.subr.mxu0 0.0
    %2027 = vmatpush1.msra.mxu0 0.0
    %2028 = vmatprep.subr.mxu0 0.0
    %2029 = vmatpush1.msra.mxu0 0.0
    %2030 = vmatprep.subr.mxu0 0.0
    %2031 = vmatpush1.msra.mxu0 0.0
    %2032 = vmatprep.subr.mxu0 0.0
    %2033 = vmatpush1.msra.mxu0 0.0
    %2034 = vmatprep.subr.mxu0 0.0
    %2035 = vmatpush1.msra.mxu0 0.0
    %2036 = vmatprep.subr.mxu0 0.0
    %2037 = vmatpush1.msra.mxu0 0.0
    %2038 = vmatprep.subr.mxu0 0.0
    %2039 = vmatpush1.msra.mxu0 0.0
    %2040 = vmatprep.subr.mxu0 0.0
    %2041 = vmatpush1.msra.mxu0 0.0
    %2042 = vmatprep.subr.mxu0 0.0
    %2043 = vmatpush1.msra.mxu0 0.0
    %2044 = vmatprep.subr.mxu0 0.0
    %2045 = vmatpush1.msra.mxu0 0.0
    %2046 = vmatprep.subr.mxu0 0.0
    %2047 = vmatpush1.msra.mxu0 0.0
    %2048 = vmatprep.subr.mxu0 0.0
    %2049 = vmatpush1.msra.mxu0 0.0
    %2050 = vmatprep.subr.mxu0 0.0
    %2051 = vmatpush1.msra.mxu0 0.0
    %2052 = vmatprep.subr.mxu0 0.0
    %2053 = vmatpush1.msra.mxu0 0.0
    %2054 = vmatprep.subr.mxu0 0.0
    %2055 = vmatpush1.msra.mxu0 0.0
    %2056 = vmatprep.subr.mxu0 0.0
    %2057 = vmatpush1.msra.mxu0 0.0
    %2058 = vmatprep.subr.mxu0 0.0
    %2059 = vmatpush1.msra.mxu0 0.0
    %2060 = vmatprep.subr.mxu0 0.0
    %2061 = vmatpush1.msra.mxu0 0.0
    %2062 = vmatprep.subr.mxu0 0.0
    %2063 = vmatpush1.msra.mxu0 0.0
    %2064 = vmatprep.subr.mxu0 0.0
    %2065 = vmatpush1.msra.mxu0 0.0
    %2066 = vmatprep.subr.mxu0 0.0
    %2067 = vmatpush1.msra.mxu0 0.0
    %2068 = vmatprep.subr.mxu0 0.0
    %2069 = vmatpush1.msra.mxu0 0.0
    %2070 = vmatprep.subr.mxu0 0.0
    %2071 = vmatpush1.msra.mxu0 0.0
    %2072 = vmatprep.subr.mxu0 0.0
    %2073 = vmatpush1.msra.mxu0 0.0
    %2074 = vmatprep.subr.mxu0 0.0
    %2075 = vmatpush1.msra.mxu0 0.0
    %2076 = vmatprep.subr.mxu0 0.0
    %2077 = vmatpush1.msra.mxu0 0.0
    %2078 = vmatprep.subr.mxu0 0.0
    %2079 = vmatpush1.msra.mxu0 0.0
    %2080 = vmatprep.subr.mxu0 0.0
    %2081 = vmatpush1.msra.mxu0 0.0
    %2082 = vmatprep.subr.mxu0 0.0
    %2083 = vmatpush1.msra.mxu0 0.0
    %2084 = vmatprep.subr.mxu0 0.0
    %2085 = vmatpush1.msra.mxu0 0.0
    %2086 = vmatprep.mubr.f32.mxu0 0.0
    %2087 = vmatmul.mubr.f32.gmra.mrb[0].mxu0 %v2020
    %v2088 = vpop.f32.mrb[0].mxu0
    %v2089 = vadd.f32 %v2017, %v2088
    %v2090 = vpop.f32.mrb[0].mxu0
    %2091 = vdwg.mxu0
    %vm2092 = vcmask 25600
    %2093 = vst.msk [vmem:[#allocation8] sm:$0x3] %vm2092, %v2089
    // Predicated region
    $region54: #{tpu_custom_call.1} parent=1 // pred_check
      _
    $region55: #{tpu_custom_call.1} parent=1 // pred_check_branch
      %2095 = sbr.rel (0) target = $region57
    $region56: #{tpu_custom_call.1} parent=1 // pred_region
      %s2097 = ssub.s32 32, 32
      %2098 = vsyncadd [#allocation4], %s2097
      %s2100 = sshll.u32 [#allocation8], 4
      %s2101 = int_to_ptr.vmem [resolvable:$true] %s2100
      %2103 = dma.vmem_to_hbm [thread:$0]  %s2101, 32, %s10, [#allocation4]
    $region57: #{tpu_custom_call.1} parent=1 // pred_fallthru
      _
    // Predicated region
    $region58: #{tpu_custom_call.1} parent=1 // pred_check
      _
    $region59: #{tpu_custom_call.1} parent=1 // pred_check_branch
      %2105 = sbr.rel (0) target = $region61
    $region60: #{tpu_custom_call.1} parent=1 // pred_region
      %2106 = dma.done [#allocation4], 32
    $region61: #{tpu_custom_call.1} parent=1 // pred_fallthru
      _
    %2107 = vsyncpa [#allocation3], 1
    %2108 = vsyncpa [#allocation6], 1
    %2109 = vsyncpa [#allocation4], 1

</llo_original>
